<compile_context>
chip_gen: v7x
topology: tpu7x:2x2x1
jax: 0.10.0
libtpu: 0.0.40
codegen_flags: <defaults>
</compile_context>

<pallas_src>
import math
import functools

import jax
import jax.numpy as jnp
from jax.experimental import pallas as pl
from jax.experimental.pallas import tpu as pltpu


def _layer_norm(y, gamma, beta, eps=1e-5):
    mean = jnp.mean(y, axis=-1, keepdims=True)
    var = jnp.mean((y - mean) ** 2, axis=-1, keepdims=True)
    inv = jax.lax.rsqrt(var + eps)
    return (y - mean) * inv * gamma + beta


def _encoder_kernel(num_heads,
                    x_ref,                              # (Bt, S, E) f32 input (resident over layers)
                    wqkv_ref, wo_ref, w1_ref, w2_ref,   # bf16 weights, layer-blocked
                    bqkv_ref, vec_ref, b1_ref,          # f32 bias / LN slabs
                    o_ref,                              # (Bt, S, E) f32 resident activation / output
                    mask_ref,                           # (S, S) f32 scratch: causal mask
                    qkv_scr,                            # (Bt*S, 3E) f32 scratch
                    ctx_scr):                           # (Bt*S, E)  f32 scratch (heads, pre-Wo)
    l = pl.program_id(1)
    Bt, S, E = x_ref.shape
    H = num_heads
    D = E // H
    M = Bt * S
    scale = 1.0 / math.sqrt(D)

    # Causal mask built once per batch block (first layer step), reused from
    # VMEM for every layer -> no per-layer O(S^2) VPU rebuild.
    @pl.when(l == 0)
    def _():
        row = jax.lax.broadcasted_iota(jnp.int32, (S, S), 0)
        col = jax.lax.broadcasted_iota(jnp.int32, (S, S), 1)
        mask_ref[...] = jnp.where(col <= row, jnp.float32(0.0), jnp.float32(-1e30))

    # Seed the activation directly from x on the first layer (no store+reload),
    # otherwise continue from the resident output block of the previous layer.
    x = jnp.where(l == 0, x_ref[...], o_ref[...]).reshape(M, E)

    # --- fused QKV projection over all Bt*S rows (one fat MXU matmul) -------
    qkv = jnp.dot(x.astype(jnp.bfloat16), wqkv_ref[0],
                  preferred_element_type=jnp.float32) + bqkv_ref[0]
    qkv_scr[...] = qkv

    # Packed per-layer vectors: rows = [bo, g1, be1, b2, g2, be2]
    vec = vec_ref[0]                                   # (6, E) f32
    bo, g1, be1 = vec[0:1, :], vec[1:2, :], vec[2:3, :]
    b2, g2, be2 = vec[3:4, :], vec[4:5, :], vec[5:6, :]

    mask = mask_ref[...]                               # (S, S) f32

    # --- multi-head causal attention -----------------------------------------
    # fori_loop over batch rows bounds live state to one row-block; heads are a
    # short static loop with lane-static slices.  Per-head contexts go into the
    # ctx scratch columns so the output projection below is a single full-depth
    # (M, E) @ (E, E) matmul (K = E rather than H matmuls with K = D).
    # TODO(synk): flash-style K/V tiling (online softmax) for large S.
    def attn_body(b, carry):
        r0 = pl.multiple_of(b * S, S)
        qkv_b = qkv_scr[pl.ds(r0, S), :]               # (S, 3E) f32
        for h in range(H):                             # static, small head count
            lo = h * D
            qh = (qkv_b[:, lo:lo + D] * scale).astype(jnp.bfloat16)
            kh = qkv_b[:, E + lo:E + lo + D].astype(jnp.bfloat16)
            vh = qkv_b[:, 2 * E + lo:2 * E + lo + D].astype(jnp.bfloat16)

            s = jax.lax.dot_general(qh, kh, (((1,), (1,)), ((), ())),
                                    preferred_element_type=jnp.float32)
            s = s + mask
            m = jnp.max(s, axis=-1, keepdims=True)
            p = jnp.exp(s - m)
            denom = jnp.sum(p, axis=-1, keepdims=True)
            p = (p * pl.reciprocal(denom, approx=True)).astype(jnp.bfloat16)

            ctx = jnp.dot(p, vh, preferred_element_type=jnp.float32)   # (S, D)
            ctx_scr[pl.ds(r0, S), lo:lo + D] = ctx
        return carry

    jax.lax.fori_loop(0, Bt, attn_body, 0)

    # Single full-depth output projection over all rows.
    attn = jnp.dot(ctx_scr[...].astype(jnp.bfloat16), wo_ref[0],
                   preferred_element_type=jnp.float32) + bo

    # residual + LayerNorm 1 (dropout == identity at inference)
    x1 = _layer_norm(x + attn, g1, be1)

    # --- feed-forward: Linear -> SiLU -> Linear -------------------------------
    # TODO(synk): tile along F once the (M, F) intermediate pressures VMEM.
    h1 = jnp.dot(x1.astype(jnp.bfloat16), w1_ref[0],
                 preferred_element_type=jnp.float32) + b1_ref[0]
    h1 = h1 * jax.nn.sigmoid(h1)                        # SiLU, f32 element-wise
    h2 = jnp.dot(h1.astype(jnp.bfloat16), w2_ref[0],
                 preferred_element_type=jnp.float32) + b2

    # residual + LayerNorm 2
    x2 = _layer_norm(x1 + h2, g2, be2)

    o_ref[...] = x2.reshape(Bt, S, E).astype(o_ref.dtype)


def _vmem_capacity_bytes():
    try:
        return int(pltpu.get_tpu_info().vmem_capacity_bytes)
    except Exception:
        return 64 * 1024 * 1024        # conservative (v7x-sized) fallback


def _estimate_vmem_bytes(Bt, S, E, F):
    m = Bt * S
    act = 2 * 2 * m * E * 4                                    # x + out blocks, 2-buffered
    wts = 2 * (2 * (3 * E * E + E * E + E * F + F * E)          # bf16 weights, 2-buffered
               + 4 * (3 * E + 6 * E + F))                       # f32 bias slabs
    scr = (S * S + m * 3 * E + m * E) * 4                       # mask + qkv + ctx scratch
    live = m * (3 * E + 2 * F + 6 * E) * 4                      # rough live-value headroom
    return act + wts + scr + live


def custom_transformer_encoder(x, params, num_heads, *, batch_block=None):
    """Full CustomTransformerEncoder forward in one pallas_call.

    x: (B, S, E) float32.  params: dict of layer-stacked tensors (see
    init_stacked_params).  Grid = (B // Bt, num_layers): Bt batch rows per grid
    step amortize weight DMAs; the activation stays resident across layers.
    """
    B, S, E = x.shape
    L = params["wqkv"].shape[0]
    F = params["w1"].shape[2]
    assert E % num_heads == 0

    vmem_cap = _vmem_capacity_bytes()
    vmem_limit = min(max(32 * 1024 * 1024, int(vmem_cap * 0.85)),
                     110 * 1024 * 1024)

    if batch_block is None:
        # Largest divisor of B whose working set fits comfortably in VMEM.
        batch_block = B
        while batch_block > 1 and (
                B % batch_block != 0
                or _estimate_vmem_bytes(batch_block, S, E, F) > int(0.7 * vmem_limit)):
            batch_block -= 1
    Bt = batch_block
    assert B % Bt == 0
    nb = B // Bt
    M = Bt * S

    wmap = lambda b, l: (l, 0, 0)     # per-layer weights (double-buffered prefetch)
    xmap = lambda b, l: (b, 0, 0)     # per-batch-block activation (resident over l)

    in_specs = [
        pl.BlockSpec((Bt, S, E), xmap),         # x
        pl.BlockSpec((1, E, 3 * E), wmap),      # wqkv  (bf16)
        pl.BlockSpec((1, E, E), wmap),          # wo    (bf16)
        pl.BlockSpec((1, E, F), wmap),          # w1    (bf16)
        pl.BlockSpec((1, F, E), wmap),          # w2    (bf16)
        pl.BlockSpec((1, 1, 3 * E), wmap),      # bqkv  (f32)
        pl.BlockSpec((1, 6, E), wmap),          # packed [bo,g1,be1,b2,g2,be2]
        pl.BlockSpec((1, 1, F), wmap),          # b1    (f32)
    ]
    out_spec = pl.BlockSpec((Bt, S, E), xmap)

    scratch_shapes = [
        pltpu.VMEM((S, S), jnp.float32),        # causal mask (built at l == 0)
        pltpu.VMEM((M, 3 * E), jnp.float32),    # fused QKV
        pltpu.VMEM((M, E), jnp.float32),        # per-head contexts (pre-Wo)
    ]

    kernel = functools.partial(_encoder_kernel, num_heads)
    return pl.pallas_call(
        kernel,
        out_shape=jax.ShapeDtypeStruct((B, S, E), x.dtype),
        grid_spec=pltpu.PrefetchScalarGridSpec(
            num_scalar_prefetch=0,
            grid=(nb, L),
            in_specs=in_specs,
            out_specs=out_spec,
            scratch_shapes=scratch_shapes,
        ),
        compiler_params=pltpu.CompilerParams(
            dimension_semantics=("parallel", "arbitrary"),
            vmem_limit_bytes=vmem_limit,
        ),
    )(x, params["wqkv"], params["wo"], params["w1"], params["w2"],
      params["bqkv"], params["vecs"], params["b1"])


# ----------------------------------------------------------------------------
# Deterministic synthetic parameters, packed into the layer-stacked layout.
# ----------------------------------------------------------------------------
def init_stacked_params(key, num_layers, embed_dim, ff_hidden_dim):
    E, F, L = embed_dim, ff_hidden_dim, num_layers
    s = 0.05
    keys = jax.random.split(key, L)
    wqkv, wo, w1, w2, bqkv, vecs, b1 = [], [], [], [], [], [], []
    for k in keys:
        ks = jax.random.split(k, 10)
        wq = jax.random.normal(ks[0], (E, E), jnp.float32) * s
        wk = jax.random.normal(ks[1], (E, E), jnp.float32) * s
        wv = jax.random.normal(ks[2], (E, E), jnp.float32) * s
        wqkv.append(jnp.concatenate([wq, wk, wv], axis=1))           # (E, 3E)
        wo.append(jax.random.normal(ks[3], (E, E), jnp.float32) * s)
        w1.append(jax.random.normal(ks[4], (E, F), jnp.float32) * s)
        w2.append(jax.random.normal(ks[5], (F, E), jnp.float32) * s)
        bqkv.append(jax.random.normal(ks[6], (1, 3 * E), jnp.float32) * 0.02)
        bo_v = jax.random.normal(ks[7], (E,), jnp.float32) * 0.02
        b2_v = jax.random.normal(ks[8], (E,), jnp.float32) * 0.02
        # rows: bo, ln1 gamma, ln1 beta, b2, ln2 gamma, ln2 beta
        vecs.append(jnp.stack([bo_v, jnp.ones((E,), jnp.float32),
                               jnp.zeros((E,), jnp.float32), b2_v,
                               jnp.ones((E,), jnp.float32),
                               jnp.zeros((E,), jnp.float32)]))
        b1.append(jax.random.normal(ks[9], (1, F), jnp.float32) * 0.02)
    return {
        "wqkv": jnp.stack(wqkv).astype(jnp.bfloat16),   # (L, E, 3E)
        "wo":   jnp.stack(wo).astype(jnp.bfloat16),     # (L, E, E)
        "w1":   jnp.stack(w1).astype(jnp.bfloat16),     # (L, E, F)
        "w2":   jnp.stack(w2).astype(jnp.bfloat16),     # (L, F, E)
        "bqkv": jnp.stack(bqkv),                        # (L, 1, 3E) f32
        "vecs": jnp.stack(vecs).astype(jnp.float32),    # (L, 6, E)  f32
        "b1":   jnp.stack(b1),                          # (L, 1, F)  f32
    }


# ----------------------------------------------------------------------------
# Pure-JAX reference (f32 math on the bf16-stored weights) for a sanity check.
# ----------------------------------------------------------------------------
def reference_forward(x, params, num_heads):
    B, S, E = x.shape
    H = num_heads
    D = E // H
    L = params["wqkv"].shape[0]
    idx = jnp.arange(S)
    mask = jnp.where(idx[None, :] <= idx[:, None], 0.0, -1e30).astype(jnp.float32)
    for l in range(L):
        wqkv = params["wqkv"][l].astype(jnp.float32)
        wo = params["wo"][l].astype(jnp.float32)
        w1 = params["w1"][l].astype(jnp.float32)
        w2 = params["w2"][l].astype(jnp.float32)
        bqkv = params["bqkv"][l][0]
        vec = params["vecs"][l]
        b1 = params["b1"][l][0]
        bo, g1, be1, b2, g2, be2 = vec[0], vec[1], vec[2], vec[3], vec[4], vec[5]

        qkv = jnp.einsum("bse,ef->bsf", x, wqkv) + bqkv
        q, k, v = qkv[..., :E], qkv[..., E:2 * E], qkv[..., 2 * E:]
        q = q.reshape(B, S, H, D).transpose(0, 2, 1, 3) / math.sqrt(D)
        k = k.reshape(B, S, H, D).transpose(0, 2, 1, 3)
        v = v.reshape(B, S, H, D).transpose(0, 2, 1, 3)
        s = jnp.einsum("bhqd,bhkd->bhqk", q, k) + mask
        p = jax.nn.softmax(s, axis=-1)
        ctx = jnp.einsum("bhqk,bhkd->bhqd", p, v)
        ctx = ctx.transpose(0, 2, 1, 3).reshape(B, S, E)
        attn = ctx @ wo + bo
        x = _layer_norm(x + attn, g1, be1)
        h1 = x @ w1 + b1
        h1 = h1 * jax.nn.sigmoid(h1)
        h2 = h1 @ w2 + b2
        x = _layer_norm(x + h2, g2, be2)
    return x


if __name__ == "__main__":
    # Small shapes consistent with the module's forward: (batch, seq, embed)
    num_layers = 2
    batch, seq_len, embed_dim = 2, 8, 32
    num_heads, ff_hidden_dim = 4, 64

    root = jax.random.PRNGKey(0)
    k_x, k_p = jax.random.split(root)
    x = jax.random.normal(k_x, (batch, seq_len, embed_dim), jnp.float32)
    params = init_stacked_params(k_p, num_layers, embed_dim, ff_hidden_dim)

    out = custom_transformer_encoder(x, params, num_heads)
    out = jax.block_until_ready(out)
    assert out.shape == (batch, seq_len, embed_dim)
    assert bool(jnp.all(jnp.isfinite(out)))

    ref = reference_forward(x, params, num_heads)
    max_err = float(jnp.max(jnp.abs(out - ref)))
    assert max_err < 0.1, f"kernel/reference mismatch: max_err={max_err}"
    print("KERNEL_OK")
</pallas_src>

<mosaic_0001>
module attributes {stable_mosaic.version = 11 : i64} {
  func.func @_encoder_kernel(%arg0: i32, %arg1: i32, %arg2: memref<2x8x32xf32, #tpu.memory_space<vmem>>, %arg3: memref<1x32x96xbf16, #tpu.memory_space<vmem>>, %arg4: memref<1x32x32xbf16, #tpu.memory_space<vmem>>, %arg5: memref<1x32x64xbf16, #tpu.memory_space<vmem>>, %arg6: memref<1x64x32xbf16, #tpu.memory_space<vmem>>, %arg7: memref<1x1x96xf32, #tpu.memory_space<vmem>>, %arg8: memref<1x6x32xf32, #tpu.memory_space<vmem>>, %arg9: memref<1x1x64xf32, #tpu.memory_space<vmem>>, %arg10: memref<2x8x32xf32, #tpu.memory_space<vmem>>, %arg11: memref<8x8xf32, #tpu.memory_space<vmem>>, %arg12: memref<16x96xf32, #tpu.memory_space<vmem>>, %arg13: memref<16x32xf32, #tpu.memory_space<vmem>>) attributes {dimension_semantics = [#tpu.dimension_semantics<parallel>, #tpu.dimension_semantics<arbitrary>], iteration_bounds = array<i64: 1, 2>, scalar_prefetch = 0 : i64, scratch_operands = 3 : i64, tpu.core_type = #tpu.core_type<tc>, window_params = [{transform_indices = @transform_0, window_bounds = array<i64: 2, 8, 32>}, {transform_indices = @transform_1, window_bounds = array<i64: 1, 32, 96>}, {transform_indices = @transform_2, window_bounds = array<i64: 1, 32, 32>}, {transform_indices = @transform_3, window_bounds = array<i64: 1, 32, 64>}, {transform_indices = @transform_4, window_bounds = array<i64: 1, 64, 32>}, {transform_indices = @transform_5, window_bounds = array<i64: 1, 1, 96>}, {transform_indices = @transform_6, window_bounds = array<i64: 1, 6, 32>}, {transform_indices = @transform_7, window_bounds = array<i64: 1, 1, 64>}, {transform_indices = @transform_8, window_bounds = array<i64: 2, 8, 32>}]} {
    %c0_i32 = arith.constant 0 : i32
    %0 = arith.cmpi eq, %arg1, %c0_i32 : i32
    %1 = arith.extui %0 : i1 to i32
    %c0_i32_0 = arith.constant 0 : i32
    %2 = arith.cmpi ne, %1, %c0_i32_0 : i32
    scf.if %2 {
      %102 = tpu.iota {dimensions = array<i32: 0>} : vector<8x8xi32>
      %103 = tpu.iota {dimensions = array<i32: 1>} : vector<8x8xi32>
      %104 = arith.cmpi sle, %103, %102 : vector<8x8xi32>
      %cst_53 = arith.constant 0.000000e+00 : f32
      %cst_54 = arith.constant -1.000000e+30 : f32
      %105 = vector.broadcast %cst_53 : f32 to vector<8x8xf32>
      %106 = vector.broadcast %cst_54 : f32 to vector<8x8xf32>
      %107 = arith.select %104, %105, %106 : vector<8x8xi1>, vector<8x8xf32>
      %c0_55 = arith.constant 0 : index
      %c0_56 = arith.constant 0 : index
      %108 = vector.load %arg11[%c0_55, %c0_56] : memref<8x8xf32, #tpu.memory_space<vmem>>, vector<8x8xf32>
      tpu.vector_store %arg11[%c0_55, %c0_56], %107 {strides = array<i32>} : memref<8x8xf32, #tpu.memory_space<vmem>>, vector<8x8xf32>,
    } else {
    }
    %c0_i32_1 = arith.constant 0 : i32
    %3 = arith.cmpi eq, %arg1, %c0_i32_1 : i32
    %c0 = arith.constant 0 : index
    %c0_2 = arith.constant 0 : index
    %c0_3 = arith.constant 0 : index
    %4 = vector.load %arg2[%c0, %c0_2, %c0_3] : memref<2x8x32xf32, #tpu.memory_space<vmem>>, vector<2x8x32xf32>
    %c0_4 = arith.constant 0 : index
    %c0_5 = arith.constant 0 : index
    %c0_6 = arith.constant 0 : index
    %5 = vector.load %arg10[%c0_4, %c0_5, %c0_6] : memref<2x8x32xf32, #tpu.memory_space<vmem>>, vector<2x8x32xf32>
    %6 = arith.select %3, %4, %5 : vector<2x8x32xf32>
    %7 = vector.shape_cast %6 : vector<2x8x32xf32> to vector<16x32xf32>
    %8 = arith.truncf %7 : vector<16x32xf32> to vector<16x32xbf16>
    %c0_7 = arith.constant 0 : index
    %c0_8 = arith.constant 0 : index
    %c0_9 = arith.constant 0 : index
    %9 = vector.load %arg3[%c0_7, %c0_8, %c0_9] : memref<1x32x96xbf16, #tpu.memory_space<vmem>>, vector<1x32x96xbf16>
    %10 = vector.shape_cast %9 : vector<1x32x96xbf16> to vector<32x96xbf16>
    %cst = arith.constant dense<0.000000e+00> : vector<16x96xf32>
    %11 = tpu.matmul %8, %10, %cst {dimension_numbers = #tpu.dot_dimension_numbers<[1], [0], [0], [1], [0, 0, 1, 1], [], []>} : vector<16x32xbf16>, vector<32x96xbf16>, vector<16x96xf32> -> vector<16x96xf32>
    %c0_10 = arith.constant 0 : index
    %c0_11 = arith.constant 0 : index
    %c0_12 = arith.constant 0 : index
    %12 = vector.load %arg7[%c0_10, %c0_11, %c0_12] : memref<1x1x96xf32, #tpu.memory_space<vmem>>, vector<1x1x96xf32>
    %13 = vector.shape_cast %12 : vector<1x1x96xf32> to vector<1x96xf32>
    %14 = vector.broadcast %13 : vector<1x96xf32> to vector<16x96xf32>
    %15 = arith.addf %11, %14 : vector<16x96xf32>
    %c0_13 = arith.constant 0 : index
    %c0_14 = arith.constant 0 : index
    %16 = vector.load %arg12[%c0_13, %c0_14] : memref<16x96xf32, #tpu.memory_space<vmem>>, vector<16x96xf32>
    tpu.vector_store %arg12[%c0_13, %c0_14], %15 {strides = array<i32>} : memref<16x96xf32, #tpu.memory_space<vmem>>, vector<16x96xf32>,
    %c0_15 = arith.constant 0 : index
    %c0_16 = arith.constant 0 : index
    %c0_17 = arith.constant 0 : index
    %17 = vector.load %arg8[%c0_15, %c0_16, %c0_17] : memref<1x6x32xf32, #tpu.memory_space<vmem>>, vector<1x6x32xf32>
    %18 = vector.shape_cast %17 : vector<1x6x32xf32> to vector<6x32xf32>
    %19 = vector.extract_strided_slice %18 {offsets = [0, 0], sizes = [1, 32], strides = [1, 1]} : vector<6x32xf32> to vector<1x32xf32>
    %20 = vector.extract_strided_slice %18 {offsets = [1, 0], sizes = [1, 32], strides = [1, 1]} : vector<6x32xf32> to vector<1x32xf32>
    %21 = vector.extract_strided_slice %18 {offsets = [2, 0], sizes = [1, 32], strides = [1, 1]} : vector<6x32xf32> to vector<1x32xf32>
    %22 = vector.extract_strided_slice %18 {offsets = [3, 0], sizes = [1, 32], strides = [1, 1]} : vector<6x32xf32> to vector<1x32xf32>
    %23 = vector.extract_strided_slice %18 {offsets = [4, 0], sizes = [1, 32], strides = [1, 1]} : vector<6x32xf32> to vector<1x32xf32>
    %24 = vector.extract_strided_slice %18 {offsets = [5, 0], sizes = [1, 32], strides = [1, 1]} : vector<6x32xf32> to vector<1x32xf32>
    %c0_18 = arith.constant 0 : index
    %c0_19 = arith.constant 0 : index
    %25 = vector.load %arg11[%c0_18, %c0_19] : memref<8x8xf32, #tpu.memory_space<vmem>>, vector<8x8xf32>
    %c0_i32_20 = arith.constant 0 : i32
    %c2_i32 = arith.constant 2 : i32
    %26 = arith.addi %c0_i32_20, %c2_i32 : i32
    %c1_i32 = arith.constant 1 : i32
    scf.for %arg14 = %c0_i32_20 to %26 step %c1_i32  : i32 {
      %c8_i32 = arith.constant 8 : i32
      %102 = arith.muli %arg14, %c8_i32 : i32
      %103 = tpu.assume_multiple %102, 8 : i32
      %104 = arith.index_cast %103 : i32 to index
      %c0_53 = arith.constant 0 : index
      %105 = vector.load %arg12[%104, %c0_53] : memref<16x96xf32, #tpu.memory_space<vmem>>, vector<8x96xf32>
      %106 = vector.extract_strided_slice %105 {offsets = [0, 0], sizes = [8, 8], strides = [1, 1]} : vector<8x96xf32> to vector<8x8xf32>
      %cst_54 = arith.constant 0.353553385 : f32
      %107 = vector.broadcast %cst_54 : f32 to vector<8x8xf32>
      %108 = arith.mulf %106, %107 : vector<8x8xf32>
      %109 = arith.truncf %108 : vector<8x8xf32> to vector<8x8xbf16>
      %110 = vector.extract_strided_slice %105 {offsets = [0, 32], sizes = [8, 8], strides = [1, 1]} : vector<8x96xf32> to vector<8x8xf32>
      %111 = arith.truncf %110 : vector<8x8xf32> to vector<8x8xbf16>
      %112 = vector.extract_strided_slice %105 {offsets = [0, 64], sizes = [8, 8], strides = [1, 1]} : vector<8x96xf32> to vector<8x8xf32>
      %113 = arith.truncf %112 : vector<8x8xf32> to vector<8x8xbf16>
      %cst_55 = arith.constant dense<0.000000e+00> : vector<8x8xf32>
      %114 = tpu.matmul %109, %111, %cst_55 {dimension_numbers = #tpu.dot_dimension_numbers<[1], [1], [0], [0], [0, 0, 1, 0], [], []>} : vector<8x8xbf16>, vector<8x8xbf16>, vector<8x8xf32> -> vector<8x8xf32>
      %115 = arith.addf %114, %25 : vector<8x8xf32>
      %cst_56 = arith.constant dense<0xFF800000> : vector<8xf32>
      %116 = vector.multi_reduction <maximumf>, %115, %cst_56 [1] : vector<8x8xf32> to vector<8xf32>
      %117 = vector.shape_cast %116 : vector<8xf32> to vector<8x1xf32>
      %118 = vector.broadcast %117 : vector<8x1xf32> to vector<8x8xf32>
      %119 = arith.subf %115, %118 : vector<8x8xf32>
      %120 = math.exp %119 : vector<8x8xf32>
      %cst_57 = arith.constant dense<0.000000e+00> : vector<8xf32>
      %121 = vector.multi_reduction <add>, %120, %cst_57 [1] : vector<8x8xf32> to vector<8xf32>
      %122 = vector.shape_cast %121 : vector<8xf32> to vector<8x1xf32>
      %123 = tpu.reciprocal %122 {approx = true} : vector<8x1xf32> -> vector<8x1xf32>
      %124 = vector.broadcast %123 : vector<8x1xf32> to vector<8x8xf32>
      %125 = arith.mulf %120, %124 : vector<8x8xf32>
      %126 = arith.truncf %125 : vector<8x8xf32> to vector<8x8xbf16>
      %cst_58 = arith.constant dense<0.000000e+00> : vector<8x8xf32>
      %127 = tpu.matmul %126, %113, %cst_58 {dimension_numbers = #tpu.dot_dimension_numbers<[1], [0], [0], [1], [0, 0, 1, 1], [], []>} : vector<8x8xbf16>, vector<8x8xbf16>, vector<8x8xf32> -> vector<8x8xf32>
      %128 = arith.index_cast %103 : i32 to index
      %c0_59 = arith.constant 0 : index
      %129 = vector.load %arg13[%128, %c0_59] : memref<16x32xf32, #tpu.memory_space<vmem>>, vector<8x8xf32>
      tpu.vector_store %arg13[%128, %c0_59], %127 {strides = array<i32>} : memref<16x32xf32, #tpu.memory_space<vmem>>, vector<8x8xf32>,
      %130 = vector.extract_strided_slice %105 {offsets = [0, 8], sizes = [8, 8], strides = [1, 1]} : vector<8x96xf32> to vector<8x8xf32>
      %cst_60 = arith.constant 0.353553385 : f32
      %131 = vector.broadcast %cst_60 : f32 to vector<8x8xf32>
      %132 = arith.mulf %130, %131 : vector<8x8xf32>
      %133 = arith.truncf %132 : vector<8x8xf32> to vector<8x8xbf16>
      %134 = vector.extract_strided_slice %105 {offsets = [0, 40], sizes = [8, 8], strides = [1, 1]} : vector<8x96xf32> to vector<8x8xf32>
      %135 = arith.truncf %134 : vector<8x8xf32> to vector<8x8xbf16>
      %136 = vector.extract_strided_slice %105 {offsets = [0, 72], sizes = [8, 8], strides = [1, 1]} : vector<8x96xf32> to vector<8x8xf32>
      %137 = arith.truncf %136 : vector<8x8xf32> to vector<8x8xbf16>
      %cst_61 = arith.constant dense<0.000000e+00> : vector<8x8xf32>
      %138 = tpu.matmul %133, %135, %cst_61 {dimension_numbers = #tpu.dot_dimension_numbers<[1], [1], [0], [0], [0, 0, 1, 0], [], []>} : vector<8x8xbf16>, vector<8x8xbf16>, vector<8x8xf32> -> vector<8x8xf32>
      %139 = arith.addf %138, %25 : vector<8x8xf32>
      %cst_62 = arith.constant dense<0xFF800000> : vector<8xf32>
      %140 = vector.multi_reduction <maximumf>, %139, %cst_62 [1] : vector<8x8xf32> to vector<8xf32>
      %141 = vector.shape_cast %140 : vector<8xf32> to vector<8x1xf32>
      %142 = vector.broadcast %141 : vector<8x1xf32> to vector<8x8xf32>
      %143 = arith.subf %139, %142 : vector<8x8xf32>
      %144 = math.exp %143 : vector<8x8xf32>
      %cst_63 = arith.constant dense<0.000000e+00> : vector<8xf32>
      %145 = vector.multi_reduction <add>, %144, %cst_63 [1] : vector<8x8xf32> to vector<8xf32>
      %146 = vector.shape_cast %145 : vector<8xf32> to vector<8x1xf32>
      %147 = tpu.reciprocal %146 {approx = true} : vector<8x1xf32> -> vector<8x1xf32>
      %148 = vector.broadcast %147 : vector<8x1xf32> to vector<8x8xf32>
      %149 = arith.mulf %144, %148 : vector<8x8xf32>
      %150 = arith.truncf %149 : vector<8x8xf32> to vector<8x8xbf16>
      %cst_64 = arith.constant dense<0.000000e+00> : vector<8x8xf32>
      %151 = tpu.matmul %150, %137, %cst_64 {dimension_numbers = #tpu.dot_dimension_numbers<[1], [0], [0], [1], [0, 0, 1, 1], [], []>} : vector<8x8xbf16>, vector<8x8xbf16>, vector<8x8xf32> -> vector<8x8xf32>
      %152 = arith.index_cast %103 : i32 to index
      %c8 = arith.constant 8 : index
      %153 = vector.load %arg13[%152, %c8] : memref<16x32xf32, #tpu.memory_space<vmem>>, vector<8x8xf32>
      tpu.vector_store %arg13[%152, %c8], %151 {strides = array<i32>} : memref<16x32xf32, #tpu.memory_space<vmem>>, vector<8x8xf32>,
      %154 = vector.extract_strided_slice %105 {offsets = [0, 16], sizes = [8, 8], strides = [1, 1]} : vector<8x96xf32> to vector<8x8xf32>
      %cst_65 = arith.constant 0.353553385 : f32
      %155 = vector.broadcast %cst_65 : f32 to vector<8x8xf32>
      %156 = arith.mulf %154, %155 : vector<8x8xf32>
      %157 = arith.truncf %156 : vector<8x8xf32> to vector<8x8xbf16>
      %158 = vector.extract_strided_slice %105 {offsets = [0, 48], sizes = [8, 8], strides = [1, 1]} : vector<8x96xf32> to vector<8x8xf32>
      %159 = arith.truncf %158 : vector<8x8xf32> to vector<8x8xbf16>
      %160 = vector.extract_strided_slice %105 {offsets = [0, 80], sizes = [8, 8], strides = [1, 1]} : vector<8x96xf32> to vector<8x8xf32>
      %161 = arith.truncf %160 : vector<8x8xf32> to vector<8x8xbf16>
      %cst_66 = arith.constant dense<0.000000e+00> : vector<8x8xf32>
      %162 = tpu.matmul %157, %159, %cst_66 {dimension_numbers = #tpu.dot_dimension_numbers<[1], [1], [0], [0], [0, 0, 1, 0], [], []>} : vector<8x8xbf16>, vector<8x8xbf16>, vector<8x8xf32> -> vector<8x8xf32>
      %163 = arith.addf %162, %25 : vector<8x8xf32>
      %cst_67 = arith.constant dense<0xFF800000> : vector<8xf32>
      %164 = vector.multi_reduction <maximumf>, %163, %cst_67 [1] : vector<8x8xf32> to vector<8xf32>
      %165 = vector.shape_cast %164 : vector<8xf32> to vector<8x1xf32>
      %166 = vector.broadcast %165 : vector<8x1xf32> to vector<8x8xf32>
      %167 = arith.subf %163, %166 : vector<8x8xf32>
      %168 = math.exp %167 : vector<8x8xf32>
      %cst_68 = arith.constant dense<0.000000e+00> : vector<8xf32>
      %169 = vector.multi_reduction <add>, %168, %cst_68 [1] : vector<8x8xf32> to vector<8xf32>
      %170 = vector.shape_cast %169 : vector<8xf32> to vector<8x1xf32>
      %171 = tpu.reciprocal %170 {approx = true} : vector<8x1xf32> -> vector<8x1xf32>
      %172 = vector.broadcast %171 : vector<8x1xf32> to vector<8x8xf32>
      %173 = arith.mulf %168, %172 : vector<8x8xf32>
      %174 = arith.truncf %173 : vector<8x8xf32> to vector<8x8xbf16>
      %cst_69 = arith.constant dense<0.000000e+00> : vector<8x8xf32>
      %175 = tpu.matmul %174, %161, %cst_69 {dimension_numbers = #tpu.dot_dimension_numbers<[1], [0], [0], [1], [0, 0, 1, 1], [], []>} : vector<8x8xbf16>, vector<8x8xbf16>, vector<8x8xf32> -> vector<8x8xf32>
      %176 = arith.index_cast %103 : i32 to index
      %c16 = arith.constant 16 : index
      %177 = vector.load %arg13[%176, %c16] : memref<16x32xf32, #tpu.memory_space<vmem>>, vector<8x8xf32>
      tpu.vector_store %arg13[%176, %c16], %175 {strides = array<i32>} : memref<16x32xf32, #tpu.memory_space<vmem>>, vector<8x8xf32>,
      %178 = vector.extract_strided_slice %105 {offsets = [0, 24], sizes = [8, 8], strides = [1, 1]} : vector<8x96xf32> to vector<8x8xf32>
      %cst_70 = arith.constant 0.353553385 : f32
      %179 = vector.broadcast %cst_70 : f32 to vector<8x8xf32>
      %180 = arith.mulf %178, %179 : vector<8x8xf32>
      %181 = arith.truncf %180 : vector<8x8xf32> to vector<8x8xbf16>
      %182 = vector.extract_strided_slice %105 {offsets = [0, 56], sizes = [8, 8], strides = [1, 1]} : vector<8x96xf32> to vector<8x8xf32>
      %183 = arith.truncf %182 : vector<8x8xf32> to vector<8x8xbf16>
      %184 = vector.extract_strided_slice %105 {offsets = [0, 88], sizes = [8, 8], strides = [1, 1]} : vector<8x96xf32> to vector<8x8xf32>
      %185 = arith.truncf %184 : vector<8x8xf32> to vector<8x8xbf16>
      %cst_71 = arith.constant dense<0.000000e+00> : vector<8x8xf32>
      %186 = tpu.matmul %181, %183, %cst_71 {dimension_numbers = #tpu.dot_dimension_numbers<[1], [1], [0], [0], [0, 0, 1, 0], [], []>} : vector<8x8xbf16>, vector<8x8xbf16>, vector<8x8xf32> -> vector<8x8xf32>
      %187 = arith.addf %186, %25 : vector<8x8xf32>
      %cst_72 = arith.constant dense<0xFF800000> : vector<8xf32>
      %188 = vector.multi_reduction <maximumf>, %187, %cst_72 [1] : vector<8x8xf32> to vector<8xf32>
      %189 = vector.shape_cast %188 : vector<8xf32> to vector<8x1xf32>
      %190 = vector.broadcast %189 : vector<8x1xf32> to vector<8x8xf32>
      %191 = arith.subf %187, %190 : vector<8x8xf32>
      %192 = math.exp %191 : vector<8x8xf32>
      %cst_73 = arith.constant dense<0.000000e+00> : vector<8xf32>
      %193 = vector.multi_reduction <add>, %192, %cst_73 [1] : vector<8x8xf32> to vector<8xf32>
      %194 = vector.shape_cast %193 : vector<8xf32> to vector<8x1xf32>
      %195 = tpu.reciprocal %194 {approx = true} : vector<8x1xf32> -> vector<8x1xf32>
      %196 = vector.broadcast %195 : vector<8x1xf32> to vector<8x8xf32>
      %197 = arith.mulf %192, %196 : vector<8x8xf32>
      %198 = arith.truncf %197 : vector<8x8xf32> to vector<8x8xbf16>
      %cst_74 = arith.constant dense<0.000000e+00> : vector<8x8xf32>
      %199 = tpu.matmul %198, %185, %cst_74 {dimension_numbers = #tpu.dot_dimension_numbers<[1], [0], [0], [1], [0, 0, 1, 1], [], []>} : vector<8x8xbf16>, vector<8x8xbf16>, vector<8x8xf32> -> vector<8x8xf32>
      %200 = arith.index_cast %103 : i32 to index
      %c24 = arith.constant 24 : index
      %201 = vector.load %arg13[%200, %c24] : memref<16x32xf32, #tpu.memory_space<vmem>>, vector<8x8xf32>
      tpu.vector_store %arg13[%200, %c24], %199 {strides = array<i32>} : memref<16x32xf32, #tpu.memory_space<vmem>>, vector<8x8xf32>,
    }
    %c2_i32_21 = arith.constant 2 : i32
    %c0_22 = arith.constant 0 : index
    %c0_23 = arith.constant 0 : index
    %27 = vector.load %arg13[%c0_22, %c0_23] : memref<16x32xf32, #tpu.memory_space<vmem>>, vector<16x32xf32>
    %28 = arith.truncf %27 : vector<16x32xf32> to vector<16x32xbf16>
    %c0_24 = arith.constant 0 : index
    %c0_25 = arith.constant 0 : index
    %c0_26 = arith.constant 0 : index
    %29 = vector.load %arg4[%c0_24, %c0_25, %c0_26] : memref<1x32x32xbf16, #tpu.memory_space<vmem>>, vector<1x32x32xbf16>
    %30 = vector.shape_cast %29 : vector<1x32x32xbf16> to vector<32x32xbf16>
    %cst_27 = arith.constant dense<0.000000e+00> : vector<16x32xf32>
    %31 = tpu.matmul %28, %30, %cst_27 {dimension_numbers = #tpu.dot_dimension_numbers<[1], [0], [0], [1], [0, 0, 1, 1], [], []>} : vector<16x32xbf16>, vector<32x32xbf16>, vector<16x32xf32> -> vector<16x32xf32>
    %32 = vector.broadcast %19 : vector<1x32xf32> to vector<16x32xf32>
    %33 = arith.addf %31, %32 : vector<16x32xf32>
    %34 = arith.addf %7, %33 : vector<16x32xf32>
    %cst_28 = arith.constant dense<0.000000e+00> : vector<16xf32>
    %35 = vector.multi_reduction <add>, %34, %cst_28 [1] : vector<16x32xf32> to vector<16xf32>
    %36 = vector.shape_cast %35 : vector<16xf32> to vector<16x1xf32>
    %cst_29 = arith.constant 3.200000e+01 : f32
    %37 = vector.broadcast %cst_29 : f32 to vector<16x1xf32>
    %38 = arith.divf %36, %37 : vector<16x1xf32>
    %39 = vector.broadcast %38 : vector<16x1xf32> to vector<16x32xf32>
    %40 = arith.subf %34, %39 : vector<16x32xf32>
    %41 = arith.mulf %40, %40 : vector<16x32xf32>
    %cst_30 = arith.constant dense<0.000000e+00> : vector<16xf32>
    %42 = vector.multi_reduction <add>, %41, %cst_30 [1] : vector<16x32xf32> to vector<16xf32>
    %43 = vector.shape_cast %42 : vector<16xf32> to vector<16x1xf32>
    %cst_31 = arith.constant 3.200000e+01 : f32
    %44 = vector.broadcast %cst_31 : f32 to vector<16x1xf32>
    %45 = arith.divf %43, %44 : vector<16x1xf32>
    %cst_32 = arith.constant 9.99999974E-6 : f32
    %46 = vector.broadcast %cst_32 : f32 to vector<16x1xf32>
    %47 = arith.addf %45, %46 : vector<16x1xf32>
    %48 = math.rsqrt %47 : vector<16x1xf32>
    %49 = vector.broadcast %38 : vector<16x1xf32> to vector<16x32xf32>
    %50 = arith.subf %34, %49 : vector<16x32xf32>
    %51 = vector.broadcast %48 : vector<16x1xf32> to vector<16x32xf32>
    %52 = arith.mulf %50, %51 : vector<16x32xf32>
    %53 = vector.broadcast %20 : vector<1x32xf32> to vector<16x32xf32>
    %54 = arith.mulf %52, %53 : vector<16x32xf32>
    %55 = vector.broadcast %21 : vector<1x32xf32> to vector<16x32xf32>
    %56 = arith.addf %54, %55 : vector<16x32xf32>
    %57 = arith.truncf %56 : vector<16x32xf32> to vector<16x32xbf16>
    %c0_33 = arith.constant 0 : index
    %c0_34 = arith.constant 0 : index
    %c0_35 = arith.constant 0 : index
    %58 = vector.load %arg5[%c0_33, %c0_34, %c0_35] : memref<1x32x64xbf16, #tpu.memory_space<vmem>>, vector<1x32x64xbf16>
    %59 = vector.shape_cast %58 : vector<1x32x64xbf16> to vector<32x64xbf16>
    %cst_36 = arith.constant dense<0.000000e+00> : vector<16x64xf32>
    %60 = tpu.matmul %57, %59, %cst_36 {dimension_numbers = #tpu.dot_dimension_numbers<[1], [0], [0], [1], [0, 0, 1, 1], [], []>} : vector<16x32xbf16>, vector<32x64xbf16>, vector<16x64xf32> -> vector<16x64xf32>
    %c0_37 = arith.constant 0 : index
    %c0_38 = arith.constant 0 : index
    %c0_39 = arith.constant 0 : index
    %61 = vector.load %arg9[%c0_37, %c0_38, %c0_39] : memref<1x1x64xf32, #tpu.memory_space<vmem>>, vector<1x1x64xf32>
    %62 = vector.shape_cast %61 : vector<1x1x64xf32> to vector<1x64xf32>
    %63 = vector.broadcast %62 : vector<1x64xf32> to vector<16x64xf32>
    %64 = arith.addf %60, %63 : vector<16x64xf32>
    %65 = arith.negf %64 : vector<16x64xf32>
    %66 = math.exp %65 : vector<16x64xf32>
    %cst_40 = arith.constant 1.000000e+00 : f32
    %67 = vector.broadcast %cst_40 : f32 to vector<16x64xf32>
    %68 = arith.addf %67, %66 : vector<16x64xf32>
    %69 = arith.divf %67, %68 : vector<16x64xf32>
    %70 = arith.mulf %64, %69 : vector<16x64xf32>
    %71 = arith.truncf %70 : vector<16x64xf32> to vector<16x64xbf16>
    %c0_41 = arith.constant 0 : index
    %c0_42 = arith.constant 0 : index
    %c0_43 = arith.constant 0 : index
    %72 = vector.load %arg6[%c0_41, %c0_42, %c0_43] : memref<1x64x32xbf16, #tpu.memory_space<vmem>>, vector<1x64x32xbf16>
    %73 = vector.shape_cast %72 : vector<1x64x32xbf16> to vector<64x32xbf16>
    %cst_44 = arith.constant dense<0.000000e+00> : vector<16x32xf32>
    %74 = tpu.matmul %71, %73, %cst_44 {dimension_numbers = #tpu.dot_dimension_numbers<[1], [0], [0], [1], [0, 0, 1, 1], [], []>} : vector<16x64xbf16>, vector<64x32xbf16>, vector<16x32xf32> -> vector<16x32xf32>
    %75 = vector.broadcast %22 : vector<1x32xf32> to vector<16x32xf32>
    %76 = arith.addf %74, %75 : vector<16x32xf32>
    %77 = arith.addf %56, %76 : vector<16x32xf32>
    %cst_45 = arith.constant dense<0.000000e+00> : vector<16xf32>
    %78 = vector.multi_reduction <add>, %77, %cst_45 [1] : vector<16x32xf32> to vector<16xf32>
    %79 = vector.shape_cast %78 : vector<16xf32> to vector<16x1xf32>
    %cst_46 = arith.constant 3.200000e+01 : f32
    %80 = vector.broadcast %cst_46 : f32 to vector<16x1xf32>
    %81 = arith.divf %79, %80 : vector<16x1xf32>
    %82 = vector.broadcast %81 : vector<16x1xf32> to vector<16x32xf32>
    %83 = arith.subf %77, %82 : vector<16x32xf32>
    %84 = arith.mulf %83, %83 : vector<16x32xf32>
    %cst_47 = arith.constant dense<0.000000e+00> : vector<16xf32>
    %85 = vector.multi_reduction <add>, %84, %cst_47 [1] : vector<16x32xf32> to vector<16xf32>
    %86 = vector.shape_cast %85 : vector<16xf32> to vector<16x1xf32>
    %cst_48 = arith.constant 3.200000e+01 : f32
    %87 = vector.broadcast %cst_48 : f32 to vector<16x1xf32>
    %88 = arith.divf %86, %87 : vector<16x1xf32>
    %cst_49 = arith.constant 9.99999974E-6 : f32
    %89 = vector.broadcast %cst_49 : f32 to vector<16x1xf32>
    %90 = arith.addf %88, %89 : vector<16x1xf32>
    %91 = math.rsqrt %90 : vector<16x1xf32>
    %92 = vector.broadcast %81 : vector<16x1xf32> to vector<16x32xf32>
    %93 = arith.subf %77, %92 : vector<16x32xf32>
    %94 = vector.broadcast %91 : vector<16x1xf32> to vector<16x32xf32>
    %95 = arith.mulf %93, %94 : vector<16x32xf32>
    %96 = vector.broadcast %23 : vector<1x32xf32> to vector<16x32xf32>
    %97 = arith.mulf %95, %96 : vector<16x32xf32>
    %98 = vector.broadcast %24 : vector<1x32xf32> to vector<16x32xf32>
    %99 = arith.addf %97, %98 : vector<16x32xf32>
    %100 = vector.shape_cast %99 : vector<16x32xf32> to vector<2x8x32xf32>
    %c0_50 = arith.constant 0 : index
    %c0_51 = arith.constant 0 : index
    %c0_52 = arith.constant 0 : index
    %101 = vector.load %arg10[%c0_50, %c0_51, %c0_52] : memref<2x8x32xf32, #tpu.memory_space<vmem>>, vector<2x8x32xf32>
    tpu.vector_store %arg10[%c0_50, %c0_51, %c0_52], %100 {strides = array<i32>} : memref<2x8x32xf32, #tpu.memory_space<vmem>>, vector<2x8x32xf32>,
    return
  }
  func.func @transform_0(%arg0: i32, %arg1: i32) -> (i32, i32, i32) {
    %c0_i32 = arith.constant 0 : i32
    %c0_i32_0 = arith.constant 0 : i32
    %c0_i32_1 = arith.constant 0 : i32
    return %arg0, %c0_i32, %c0_i32_0 : i32, i32, i32
  }
  func.func @transform_1(%arg0: i32, %arg1: i32) -> (i32, i32, i32) {
    %c0_i32 = arith.constant 0 : i32
    %c0_i32_0 = arith.constant 0 : i32
    %c0_i32_1 = arith.constant 0 : i32
    return %arg1, %c0_i32, %c0_i32_0 : i32, i32, i32
  }
  func.func @transform_2(%arg0: i32, %arg1: i32) -> (i32, i32, i32) {
    %c0_i32 = arith.constant 0 : i32
    %c0_i32_0 = arith.constant 0 : i32
    %c0_i32_1 = arith.constant 0 : i32
    return %arg1, %c0_i32, %c0_i32_0 : i32, i32, i32
  }
  func.func @transform_3(%arg0: i32, %arg1: i32) -> (i32, i32, i32) {
    %c0_i32 = arith.constant 0 : i32
    %c0_i32_0 = arith.constant 0 : i32
    %c0_i32_1 = arith.constant 0 : i32
    return %arg1, %c0_i32, %c0_i32_0 : i32, i32, i32
  }
  func.func @transform_4(%arg0: i32, %arg1: i32) -> (i32, i32, i32) {
    %c0_i32 = arith.constant 0 : i32
    %c0_i32_0 = arith.constant 0 : i32
    %c0_i32_1 = arith.constant 0 : i32
    return %arg1, %c0_i32, %c0_i32_0 : i32, i32, i32
  }
  func.func @transform_5(%arg0: i32, %arg1: i32) -> (i32, i32, i32) {
    %c0_i32 = arith.constant 0 : i32
    %c0_i32_0 = arith.constant 0 : i32
    %c0_i32_1 = arith.constant 0 : i32
    return %arg1, %c0_i32, %c0_i32_0 : i32, i32, i32
  }
  func.func @transform_6(%arg0: i32, %arg1: i32) -> (i32, i32, i32) {
    %c0_i32 = arith.constant 0 : i32
    %c0_i32_0 = arith.constant 0 : i32
    %c0_i32_1 = arith.constant 0 : i32
    return %arg1, %c0_i32, %c0_i32_0 : i32, i32, i32
  }
  func.func @transform_7(%arg0: i32, %arg1: i32) -> (i32, i32, i32) {
    %c0_i32 = arith.constant 0 : i32
    %c0_i32_0 = arith.constant 0 : i32
    %c0_i32_1 = arith.constant 0 : i32
    return %arg1, %c0_i32, %c0_i32_0 : i32, i32, i32
  }
  func.func @transform_8(%arg0: i32, %arg1: i32) -> (i32, i32, i32) {
    %c0_i32 = arith.constant 0 : i32
    %c0_i32_0 = arith.constant 0 : i32
    %c0_i32_1 = arith.constant 0 : i32
    return %arg0, %c0_i32, %c0_i32_0 : i32, i32, i32
  }
}

</mosaic_0001>

<llo_original>
// kernel: tpu_custom_call.1
$region0: #{tpu_custom_call.1}
  #allocation0 [shape = 'u32[]', space=smem, size = 0x4, offset = 0x4, fixed_abs, tag = 'smem constant byte address 0x4 - core index']
  #allocation1 [shape = 'u32[144,128]{1,0:T(1,128)}', space=vmem, size = 0x12000, scoped, tag = 'internal scratch']
  #allocation2 [shape = 'f32[8,8]{1,0:T(8,128)}', space=vmem, size = 0x1000, scoped, tag = 'scratch operand']
  #allocation3 [shape = 'f32[16,96]{1,0:T(8,128)}', space=vmem, size = 0x2000, scoped, tag = 'scratch operand']
  #allocation4 [shape = 'f32[16,32]{1,0:T(8,128)}', space=vmem, size = 0x2000, scoped, tag = 'scratch operand']
  %s0 = inlined_call_operand.hbm [shape: f32[2,8,32], index: 0, kind: input, shape index: {}]
  %s1 = inlined_call_operand.vmem [shape: bf16[2,32,96], index: 1, kind: input, shape index: {}]
  %s2 = inlined_call_operand.vmem [shape: bf16[2,32,32], index: 2, kind: input, shape index: {}]
  %s3 = inlined_call_operand.vmem [shape: bf16[2,32,64], index: 3, kind: input, shape index: {}]
  %s4 = inlined_call_operand.vmem [shape: bf16[2,64,32], index: 4, kind: input, shape index: {}]
  %s5 = inlined_call_operand.vmem [shape: f32[2,1,96], index: 5, kind: input, shape index: {}]
  %s6 = inlined_call_operand.vmem [shape: f32[2,6,32], index: 6, kind: input, shape index: {}]
  %s7 = inlined_call_operand.vmem [shape: f32[2,1,64], index: 7, kind: input, shape index: {}]
  %s8 = inlined_call_operand.hbm [shape: f32[2,8,32], index: 8, kind: output, shape index: {}]
  %s9 = sld [smem:[#allocation0]]
  $region80: #{tpu_custom_call.1} parent=0
    _
  %s11 = ssub.s32 1, %s9
  %s12 = scalar_select 0, %s11, %s9
  $region1: #{tpu_custom_call.1} parent=0
    #allocation5 [shape = 'u8[8192]{0}', space=vmem, size = 0x2000, scoped, tag = 'input window, operand 0, single buffered']
    #allocation6 [shape = 's32[2]{0}', space=sflag, size = 0x8, scoped, tag = 'scoped memory for tpu_custom_call.1']
    #allocation7 [shape = 's32[2]{0}', space=sflag, size = 0x8, scoped, tag = 'scoped memory for tpu_custom_call.1']
    #allocation8 [shape = 'u8[8192]{0}', space=vmem, size = 0x2000, scoped, tag = 'output window, operand 0, single buffered']
    %13 = vsyncpa [#allocation6], 0
    %14 = vsyncpa [#allocation7], 0
    loop: start=0, step=1, limit=4
    $region2: #{tpu_custom_call.1} parent=1 // loop_pre_header
      _
    $region3: #{tpu_custom_call.1} parent=1 // loop_header
      %s16 = sphi 0, %s20
      %p17 = scmp.ge.s32.totalorder %s16, 4
      %s23 = sphi 0, %s35
      %s24 = sphi 0, %s31
      %s25 = sphi 0, %s23
      %s26 = sphi 0, %s24
      %s27 = sphi 0, %s25
      %s28 = sphi 0, %s26
      %s38 = sphi 0, %s40
      %s41 = sphi 0, %s38
      %s42 = sphi 0, %s41
      %s58 = sphi 0, %s42
      %s64 = sphi 0, %s66
      %s67 = sphi 0, %s64
      %s68 = sphi 0, %s67
      %s84 = sphi 0, %s68
      %s90 = sphi 0, %s92
      %s93 = sphi 0, %s90
      %s94 = sphi 0, %s93
      %s110 = sphi 0, %s94
      %s116 = sphi 0, %s118
      %s119 = sphi 0, %s116
      %s120 = sphi 0, %s119
      %s136 = sphi 0, %s120
      %s142 = sphi 0, %s144
      %s145 = sphi 0, %s142
      %s146 = sphi 0, %s145
      %s162 = sphi 0, %s146
      %s168 = sphi 0, %s170
      %s171 = sphi 0, %s168
      %s172 = sphi 0, %s171
      %s188 = sphi 0, %s172
      %s194 = sphi 0, %s196
      %s197 = sphi 0, %s194
      %s198 = sphi 0, %s197
      %s214 = sphi 0, %s198
      %s220 = sphi 0, %s222
      %s223 = sphi 0, %s220
      %s224 = sphi 0, %s223
      %s240 = sphi 0, %s224
      %s246 = sphi 0, %s248
      %s249 = sphi 0, %s246
      %s250 = sphi 0, %s249
      %s266 = sphi 0, %s250
    $region4: #{tpu_custom_call.1} parent=1 // loop_header_branch
      %19 = sbr.rel (%p17) target = $region8
    $region5: #{tpu_custom_call.1} parent=1 // loop_body
      %s21 = ssub.s32 %s16, 1
      %s22 = ssub.s32 %s16, 2
      %s29 = sadd.s32 1, %s24
      %p30 = scmp.ge.s32.totalorder %s29, 2
      %s31 = scalar_select %p30, 0, %s29
      %s32 = sadd.s32 1, %s23
      %s33 = scalar_select %p30, %s32, %s23
      %p34 = scmp.ge.s32.totalorder %s33, 1
      %s35 = scalar_select %p34, 0, %s33
      %s36 = ssub.s32 %s23, %s35
      %p37 = scmp.eq.s32.totalorder %s36, 0
      %s39 = sadd.s32 %s38, 1
      %s40 = scalar_select %p37, %s38, %s39
      %p43 = pneg %p37
      %p44 = scmp.eq.s32.totalorder %s16, 1
      %p45 = por %p43, %p44
      %p46 = scmp.ne.s32.totalorder %s38, %s41
      %p47 = scmp.eq.s32.totalorder %s16, 0
      %p48 = por %p46, %p47
      %p49 = scmp.ne.s32.totalorder %s38, %s41
      %p50 = scmp.eq.s32.totalorder %s21, 1
      %p51 = por %p49, %p50
      %p52 = scmp.ne.s32.totalorder %s41, %s42
      %p53 = scmp.eq.s32.totalorder %s21, 0
      %p54 = por %p52, %p53
      %p55 = scmp.ne.s32.totalorder %s41, %s42
      %p56 = scmp.eq.s32.totalorder %s22, 1
      %p57 = por %p55, %p56
      %p59 = scmp.ne.s32.totalorder %s42, %s58
      %p60 = scmp.eq.s32.totalorder %s22, 0
      %p61 = por %p59, %p60
      %s62 = ssub.s32 %s24, %s31
      %p63 = scmp.eq.s32.totalorder %s62, 0
      %s65 = sadd.s32 %s64, 1
      %s66 = scalar_select %p63, %s64, %s65
      %p69 = pneg %p63
      %p70 = scmp.eq.s32.totalorder %s16, 1
      %p71 = por %p69, %p70
      %p72 = scmp.ne.s32.totalorder %s64, %s67
      %p73 = scmp.eq.s32.totalorder %s16, 0
      %p74 = por %p72, %p73
      %p75 = scmp.ne.s32.totalorder %s64, %s67
      %p76 = scmp.eq.s32.totalorder %s21, 1
      %p77 = por %p75, %p76
      %p78 = scmp.ne.s32.totalorder %s67, %s68
      %p79 = scmp.eq.s32.totalorder %s21, 0
      %p80 = por %p78, %p79
      %p81 = scmp.ne.s32.totalorder %s67, %s68
      %p82 = scmp.eq.s32.totalorder %s22, 1
      %p83 = por %p81, %p82
      %p85 = scmp.ne.s32.totalorder %s68, %s84
      %p86 = scmp.eq.s32.totalorder %s22, 0
      %p87 = por %p85, %p86
      %s88 = ssub.s32 %s24, %s31
      %p89 = scmp.eq.s32.totalorder %s88, 0
      %s91 = sadd.s32 %s90, 1
      %s92 = scalar_select %p89, %s90, %s91
      %p95 = pneg %p89
      %p96 = scmp.eq.s32.totalorder %s16, 1
      %p97 = por %p95, %p96
      %p98 = scmp.ne.s32.totalorder %s90, %s93
      %p99 = scmp.eq.s32.totalorder %s16, 0
      %p100 = por %p98, %p99
      %p101 = scmp.ne.s32.totalorder %s90, %s93
      %p102 = scmp.eq.s32.totalorder %s21, 1
      %p103 = por %p101, %p102
      %p104 = scmp.ne.s32.totalorder %s93, %s94
      %p105 = scmp.eq.s32.totalorder %s21, 0
      %p106 = por %p104, %p105
      %p107 = scmp.ne.s32.totalorder %s93, %s94
      %p108 = scmp.eq.s32.totalorder %s22, 1
      %p109 = por %p107, %p108
      %p111 = scmp.ne.s32.totalorder %s94, %s110
      %p112 = scmp.eq.s32.totalorder %s22, 0
      %p113 = por %p111, %p112
      %s114 = ssub.s32 %s24, %s31
      %p115 = scmp.eq.s32.totalorder %s114, 0
      %s117 = sadd.s32 %s116, 1
      %s118 = scalar_select %p115, %s116, %s117
      %p121 = pneg %p115
      %p122 = scmp.eq.s32.totalorder %s16, 1
      %p123 = por %p121, %p122
      %p124 = scmp.ne.s32.totalorder %s116, %s119
      %p125 = scmp.eq.s32.totalorder %s16, 0
      %p126 = por %p124, %p125
      %p127 = scmp.ne.s32.totalorder %s116, %s119
      %p128 = scmp.eq.s32.totalorder %s21, 1
      %p129 = por %p127, %p128
      %p130 = scmp.ne.s32.totalorder %s119, %s120
      %p131 = scmp.eq.s32.totalorder %s21, 0
      %p132 = por %p130, %p131
      %p133 = scmp.ne.s32.totalorder %s119, %s120
      %p134 = scmp.eq.s32.totalorder %s22, 1
      %p135 = por %p133, %p134
      %p137 = scmp.ne.s32.totalorder %s120, %s136
      %p138 = scmp.eq.s32.totalorder %s22, 0
      %p139 = por %p137, %p138
      %s140 = ssub.s32 %s24, %s31
      %p141 = scmp.eq.s32.totalorder %s140, 0
      %s143 = sadd.s32 %s142, 1
      %s144 = scalar_select %p141, %s142, %s143
      %p147 = pneg %p141
      %p148 = scmp.eq.s32.totalorder %s16, 1
      %p149 = por %p147, %p148
      %p150 = scmp.ne.s32.totalorder %s142, %s145
      %p151 = scmp.eq.s32.totalorder %s16, 0
      %p152 = por %p150, %p151
      %p153 = scmp.ne.s32.totalorder %s142, %s145
      %p154 = scmp.eq.s32.totalorder %s21, 1
      %p155 = por %p153, %p154
      %p156 = scmp.ne.s32.totalorder %s145, %s146
      %p157 = scmp.eq.s32.totalorder %s21, 0
      %p158 = por %p156, %p157
      %p159 = scmp.ne.s32.totalorder %s145, %s146
      %p160 = scmp.eq.s32.totalorder %s22, 1
      %p161 = por %p159, %p160
      %p163 = scmp.ne.s32.totalorder %s146, %s162
      %p164 = scmp.eq.s32.totalorder %s22, 0
      %p165 = por %p163, %p164
      %s166 = ssub.s32 %s24, %s31
      %p167 = scmp.eq.s32.totalorder %s166, 0
      %s169 = sadd.s32 %s168, 1
      %s170 = scalar_select %p167, %s168, %s169
      %p173 = pneg %p167
      %p174 = scmp.eq.s32.totalorder %s16, 1
      %p175 = por %p173, %p174
      %p176 = scmp.ne.s32.totalorder %s168, %s171
      %p177 = scmp.eq.s32.totalorder %s16, 0
      %p178 = por %p176, %p177
      %p179 = scmp.ne.s32.totalorder %s168, %s171
      %p180 = scmp.eq.s32.totalorder %s21, 1
      %p181 = por %p179, %p180
      %p182 = scmp.ne.s32.totalorder %s171, %s172
      %p183 = scmp.eq.s32.totalorder %s21, 0
      %p184 = por %p182, %p183
      %p185 = scmp.ne.s32.totalorder %s171, %s172
      %p186 = scmp.eq.s32.totalorder %s22, 1
      %p187 = por %p185, %p186
      %p189 = scmp.ne.s32.totalorder %s172, %s188
      %p190 = scmp.eq.s32.totalorder %s22, 0
      %p191 = por %p189, %p190
      %s192 = ssub.s32 %s24, %s31
      %p193 = scmp.eq.s32.totalorder %s192, 0
      %s195 = sadd.s32 %s194, 1
      %s196 = scalar_select %p193, %s194, %s195
      %p199 = pneg %p193
      %p200 = scmp.eq.s32.totalorder %s16, 1
      %p201 = por %p199, %p200
      %p202 = scmp.ne.s32.totalorder %s194, %s197
      %p203 = scmp.eq.s32.totalorder %s16, 0
      %p204 = por %p202, %p203
      %p205 = scmp.ne.s32.totalorder %s194, %s197
      %p206 = scmp.eq.s32.totalorder %s21, 1
      %p207 = por %p205, %p206
      %p208 = scmp.ne.s32.totalorder %s197, %s198
      %p209 = scmp.eq.s32.totalorder %s21, 0
      %p210 = por %p208, %p209
      %p211 = scmp.ne.s32.totalorder %s197, %s198
      %p212 = scmp.eq.s32.totalorder %s22, 1
      %p213 = por %p211, %p212
      %p215 = scmp.ne.s32.totalorder %s198, %s214
      %p216 = scmp.eq.s32.totalorder %s22, 0
      %p217 = por %p215, %p216
      %s218 = ssub.s32 %s24, %s31
      %p219 = scmp.eq.s32.totalorder %s218, 0
      %s221 = sadd.s32 %s220, 1
      %s222 = scalar_select %p219, %s220, %s221
      %p225 = pneg %p219
      %p226 = scmp.eq.s32.totalorder %s16, 1
      %p227 = por %p225, %p226
      %p228 = scmp.ne.s32.totalorder %s220, %s223
      %p229 = scmp.eq.s32.totalorder %s16, 0
      %p230 = por %p228, %p229
      %p231 = scmp.ne.s32.totalorder %s220, %s223
      %p232 = scmp.eq.s32.totalorder %s21, 1
      %p233 = por %p231, %p232
      %p234 = scmp.ne.s32.totalorder %s223, %s224
      %p235 = scmp.eq.s32.totalorder %s21, 0
      %p236 = por %p234, %p235
      %p237 = scmp.ne.s32.totalorder %s223, %s224
      %p238 = scmp.eq.s32.totalorder %s22, 1
      %p239 = por %p237, %p238
      %p241 = scmp.ne.s32.totalorder %s224, %s240
      %p242 = scmp.eq.s32.totalorder %s22, 0
      %p243 = por %p241, %p242
      %s244 = ssub.s32 %s23, %s35
      %p245 = scmp.eq.s32.totalorder %s244, 0
      %s247 = sadd.s32 %s246, 1
      %s248 = scalar_select %p245, %s246, %s247
      %p251 = pneg %p245
      %p252 = scmp.eq.s32.totalorder %s16, 1
      %p253 = por %p251, %p252
      %p254 = scmp.ne.s32.totalorder %s246, %s249
      %p255 = scmp.eq.s32.totalorder %s16, 0
      %p256 = por %p254, %p255
      %p257 = scmp.ne.s32.totalorder %s246, %s249
      %p258 = scmp.eq.s32.totalorder %s21, 1
      %p259 = por %p257, %p258
      %p260 = scmp.ne.s32.totalorder %s249, %s250
      %p261 = scmp.eq.s32.totalorder %s21, 0
      %p262 = por %p260, %p261
      %p263 = scmp.ne.s32.totalorder %s249, %s250
      %p264 = scmp.eq.s32.totalorder %s22, 1
      %p265 = por %p263, %p264
      %p267 = scmp.ne.s32.totalorder %s250, %s266
      %p268 = scmp.eq.s32.totalorder %s22, 0
      %p269 = por %p267, %p268
      %p270 = scmp.le.s32.totalorder 1, %s16
      %p271 = scmp.lt.s32.totalorder %s16, 3
      %p272 = pnand %p270, %p271
      %p273 = pneg %p272
      // Predicated region
      $region9: #{tpu_custom_call.1} parent=5 // pred_check
        _
      $region10: #{tpu_custom_call.1} parent=5 // pred_check_branch
        %275 = sbr.rel (%p272) target = $region12
      $region11: #{tpu_custom_call.1} parent=5 // pred_region
        %s276 = ssub.s32 %s16, 1
        // Predicated region
        $region13: #{tpu_custom_call.1} parent=11 // pred_check
          %p277 = pneg %p54
        $region14: #{tpu_custom_call.1} parent=11 // pred_check_branch
          %279 = sbr.rel (%p277) target = $region16
        $region15: #{tpu_custom_call.1} parent=11 // pred_region
          %s280 = smul.u32 2, %s25
          %s282 = ssub.s32 256, 256
          %283 = vsyncadd [#allocation6], %s282
          %s284 = smul.addr %s280, 128
          %s285 = scalar_lea.hbm %s0, %s284
          %s286 = sshll.u32 [#allocation5], 4
          %s287 = int_to_ptr.vmem [resolvable:$true] %s286
          %292 = dma.hbm_to_vmem [thread:$0]  %s285, 256, %s287, [#allocation6], 128, 128, 8
        $region16: #{tpu_custom_call.1} parent=11 // pred_fallthru
          _
      $region12: #{tpu_custom_call.1} parent=5 // pred_fallthru
        _
      %p293 = scmp.lt.s32.totalorder %s16, 2
      // Predicated region
      $region17: #{tpu_custom_call.1} parent=5 // pred_check
        %p294 = pneg %p293
      $region18: #{tpu_custom_call.1} parent=5 // pred_check_branch
        %296 = sbr.rel (%p294) target = $region20
      $region19: #{tpu_custom_call.1} parent=5 // pred_region
        // Predicated region
        $region21: #{tpu_custom_call.1} parent=19 // pred_check
          %p297 = pneg %p74
        $region22: #{tpu_custom_call.1} parent=19 // pred_check_branch
          %299 = sbr.rel (%p297) target = $region24
        $region23: #{tpu_custom_call.1} parent=19 // pred_region
          %p300 = scmp.lt.s32.totalorder %s24, 1
          %s301 = scalar_select %p300, %s24, 1
          %s302 = smul.addr %s301, 4
          %s303 = smul.addr %s302, 4
          %s304 = scalar_lea.vmem %s1, %s303
        $region24: #{tpu_custom_call.1} parent=19 // pred_fallthru
          _
        // Predicated region
        $region25: #{tpu_custom_call.1} parent=19 // pred_check
          %p305 = pneg %p100
        $region26: #{tpu_custom_call.1} parent=19 // pred_check_branch
          %307 = sbr.rel (%p305) target = $region28
        $region27: #{tpu_custom_call.1} parent=19 // pred_region
          %p308 = scmp.lt.s32.totalorder %s24, 1
          %s309 = scalar_select %p308, %s24, 1
          %s310 = smul.addr %s309, 4
          %s311 = smul.addr %s310, 4
          %s312 = scalar_lea.vmem %s2, %s311
        $region28: #{tpu_custom_call.1} parent=19 // pred_fallthru
          _
        // Predicated region
        $region29: #{tpu_custom_call.1} parent=19 // pred_check
          %p313 = pneg %p126
        $region30: #{tpu_custom_call.1} parent=19 // pred_check_branch
          %315 = sbr.rel (%p313) target = $region32
        $region31: #{tpu_custom_call.1} parent=19 // pred_region
          %p316 = scmp.lt.s32.totalorder %s24, 1
          %s317 = scalar_select %p316, %s24, 1
          %s318 = smul.addr %s317, 4
          %s319 = smul.addr %s318, 4
          %s320 = scalar_lea.vmem %s3, %s319
        $region32: #{tpu_custom_call.1} parent=19 // pred_fallthru
          _
        // Predicated region
        $region33: #{tpu_custom_call.1} parent=19 // pred_check
          %p321 = pneg %p152
        $region34: #{tpu_custom_call.1} parent=19 // pred_check_branch
          %323 = sbr.rel (%p321) target = $region36
        $region35: #{tpu_custom_call.1} parent=19 // pred_region
          %p324 = scmp.lt.s32.totalorder %s24, 1
          %s325 = scalar_select %p324, %s24, 1
          %s326 = smul.addr %s325, 8
          %s327 = smul.addr %s326, 4
          %s328 = scalar_lea.vmem %s4, %s327
        $region36: #{tpu_custom_call.1} parent=19 // pred_fallthru
          _
        // Predicated region
        $region37: #{tpu_custom_call.1} parent=19 // pred_check
          %p329 = pneg %p178
        $region38: #{tpu_custom_call.1} parent=19 // pred_check_branch
          %331 = sbr.rel (%p329) target = $region40
        $region39: #{tpu_custom_call.1} parent=19 // pred_region
          %p332 = scmp.lt.s32.totalorder %s24, 1
          %s333 = scalar_select %p332, %s24, 1
          %s334 = scalar_lea.vmem %s5, %s333
        $region40: #{tpu_custom_call.1} parent=19 // pred_fallthru
          _
        // Predicated region
        $region41: #{tpu_custom_call.1} parent=19 // pred_check
          %p335 = pneg %p204
        $region42: #{tpu_custom_call.1} parent=19 // pred_check_branch
          %337 = sbr.rel (%p335) target = $region44
        $region43: #{tpu_custom_call.1} parent=19 // pred_region
          %p338 = scmp.lt.s32.totalorder %s24, 1
          %s339 = scalar_select %p338, %s24, 1
          %s340 = smul.addr %s339, 8
          %s341 = scalar_lea.vmem %s6, %s340
        $region44: #{tpu_custom_call.1} parent=19 // pred_fallthru
          _
        // Predicated region
        $region45: #{tpu_custom_call.1} parent=19 // pred_check
          %p342 = pneg %p230
        $region46: #{tpu_custom_call.1} parent=19 // pred_check_branch
          %344 = sbr.rel (%p342) target = $region48
        $region47: #{tpu_custom_call.1} parent=19 // pred_region
          %p345 = scmp.lt.s32.totalorder %s24, 1
          %s346 = scalar_select %p345, %s24, 1
          %s347 = scalar_lea.vmem %s7, %s346
        $region48: #{tpu_custom_call.1} parent=19 // pred_fallthru
          _
      $region20: #{tpu_custom_call.1} parent=5 // pred_fallthru
        _
      %p348 = scmp.le.s32.totalorder 1, %s16
      %p349 = scmp.lt.s32.totalorder %s16, 3
      %p350 = pnand %p348, %p349
      %p351 = pneg %p350
      // Predicated region
      $region49: #{tpu_custom_call.1} parent=5 // pred_check
        _
      $region50: #{tpu_custom_call.1} parent=5 // pred_check_branch
        %353 = sbr.rel (%p350) target = $region52
      $region51: #{tpu_custom_call.1} parent=5 // pred_region
        %s354 = ssub.s32 %s16, 1
        // Predicated region
        $region53: #{tpu_custom_call.1} parent=51 // pred_check
          %p355 = pneg %p54
        $region54: #{tpu_custom_call.1} parent=51 // pred_check_branch
          %357 = sbr.rel (%p355) target = $region56
        $region55: #{tpu_custom_call.1} parent=51 // pred_region
          %358 = dma.done [#allocation6], 256
        $region56: #{tpu_custom_call.1} parent=51 // pred_fallthru
          _
        %p359 = pneg %p54
        %p360 = pneg %p51
        %p361 = scmp.lt.s32.totalorder %s26, 1
        %s362 = scalar_select %p361, %s26, 1
        %s363 = smul.addr %s362, 4
        %s364 = smul.addr %s363, 4
        %s365 = scalar_lea.vmem %s1, %s364
        %p366 = pneg %p80
        %p367 = pneg %p77
        %p368 = scmp.lt.s32.totalorder %s26, 1
        %s369 = scalar_select %p368, %s26, 1
        %s370 = smul.addr %s369, 4
        %s371 = smul.addr %s370, 4
        %s372 = scalar_lea.vmem %s2, %s371
        %p373 = pneg %p106
        %p374 = pneg %p103
        %p375 = scmp.lt.s32.totalorder %s26, 1
        %s376 = scalar_select %p375, %s26, 1
        %s377 = smul.addr %s376, 4
        %s378 = smul.addr %s377, 4
        %s379 = scalar_lea.vmem %s3, %s378
        %p380 = pneg %p132
        %p381 = pneg %p129
        %p382 = scmp.lt.s32.totalorder %s26, 1
        %s383 = scalar_select %p382, %s26, 1
        %s384 = smul.addr %s383, 8
        %s385 = smul.addr %s384, 4
        %s386 = scalar_lea.vmem %s4, %s385
        %p387 = pneg %p158
        %p388 = pneg %p155
        %p389 = scmp.lt.s32.totalorder %s26, 1
        %s390 = scalar_select %p389, %s26, 1
        %s391 = scalar_lea.vmem %s5, %s390
        %p392 = pneg %p184
        %p393 = pneg %p181
        %p394 = scmp.lt.s32.totalorder %s26, 1
        %s395 = scalar_select %p394, %s26, 1
        %s396 = smul.addr %s395, 8
        %s397 = scalar_lea.vmem %s6, %s396
        %p398 = pneg %p210
        %p399 = pneg %p207
        %p400 = scmp.lt.s32.totalorder %s26, 1
        %s401 = scalar_select %p400, %s26, 1
        %s402 = scalar_lea.vmem %s7, %s401
        %p403 = pneg %p236
        %p404 = pneg %p233
        %p405 = pneg %p262
        %p406 = pneg %p259
        %s407 = smul.u32 2, %s25
        %p408 = scmp.lt.s32.totalorder %s26, 1
        %s409 = scalar_select %p408, %s26, 1
        %s410 = smul.addr %s409, 4
        %s411 = smul.addr %s410, 4
        %s412 = scalar_lea.vmem %s1, %s411
        %p413 = scmp.lt.s32.totalorder %s26, 1
        %s414 = scalar_select %p413, %s26, 1
        %s415 = smul.addr %s414, 4
        %s416 = smul.addr %s415, 4
        %s417 = scalar_lea.vmem %s2, %s416
        %p418 = scmp.lt.s32.totalorder %s26, 1
        %s419 = scalar_select %p418, %s26, 1
        %s420 = smul.addr %s419, 4
        %s421 = smul.addr %s420, 4
        %s422 = scalar_lea.vmem %s3, %s421
        %p423 = scmp.lt.s32.totalorder %s26, 1
        %s424 = scalar_select %p423, %s26, 1
        %s425 = smul.addr %s424, 8
        %s426 = smul.addr %s425, 4
        %s427 = scalar_lea.vmem %s4, %s426
        %p428 = scmp.lt.s32.totalorder %s26, 1
        %s429 = scalar_select %p428, %s26, 1
        %s430 = scalar_lea.vmem %s5, %s429
        %p431 = scmp.lt.s32.totalorder %s26, 1
        %s432 = scalar_select %p431, %s26, 1
        %s433 = smul.addr %s432, 8
        %s434 = scalar_lea.vmem %s6, %s433
        %p435 = scmp.lt.s32.totalorder %s26, 1
        %s436 = scalar_select %p435, %s26, 1
        %s437 = scalar_lea.vmem %s7, %s436
        %s438 = smul.u32 2, %s25
        %p440 = scmp.eq.s32.totalorder %s26, 0
        // Predicated region
        $region57: #{tpu_custom_call.1} parent=51 // pred_check
          %p441 = pneg %p440
        $region58: #{tpu_custom_call.1} parent=51 // pred_check_branch
          %443 = sbr.rel (%p441) target = $region60
        $region59: #{tpu_custom_call.1} parent=51 // pred_region
          %v444 = vlaneseq
          %v445 = vshrl.u32 %v444, 7
          %v446 = vlaneseq
          %v447 = vand.u32 %v446, 127
          %vm448 = vcmp.le.s32.totalorder %v447, %v445
          %v449 = vsel %vm448, 0.0, -1e+30
          %vm450 = vcmask 64512
          %451 = vst.msk [vmem:[#allocation2] sm:$0xff] %vm450, %v449
        $region60: #{tpu_custom_call.1} parent=51 // pred_fallthru
          _
        %v452 = vld [vmem:[#allocation5] sm:$0xff]
        %v453 = vld [vmem:[#allocation5 + $0x8] sm:$0xff]
        %v454 = vld [vmem:[#allocation8] sm:$0xff]
        %v455 = vld [vmem:[#allocation8 + $0x8] sm:$0xff]
        %s456 = scalar_select %p440, 1, 0
        %v457 = vstv %s456
        %vm458 = vcmp.eq.s32.totalorder %v457, 1
        %v459 = vsel %vm458, %v452, %v454
        %v460 = vsel %vm458, %v453, %v455
        %v461 = vpack.c.bf16 %v460, %v459
        %v462 = vld [vmem:[%s412] sm:$0xf]
        %v463 = vld [vmem:[%s412 + $0x4] sm:$0xf]
        %v464 = vld [vmem:[%s412 + $0x8] sm:$0xf]
        %v465 = vld [vmem:[%s412 + $0xc] sm:$0xf]
        %v466 = vld [vmem:[%s430] sm:$0x1]
        %v468 = vlaneseq
        %v469 = vshrl.u32 %v468, 7
        %v470 = vsub.s32 0, %v469
        %v471 = vrot.slane %v466, %v470
        %v477 = vunpack.c.l.b16 %v462
        %v478 = vunpack.c.l.b16 %v463
        %v479 = vunpack.c.l.b16 %v464
        %v480 = vunpack.c.l.b16 %v465
        %v481 = vpack.c.b16 %v478, %v477
        %v482 = vpack.c.b16 %v480, %v479
        %vm485 = vcmask 261120
        %v487 = vsel %vm485, %v461, 0
        %489 = vmatprep.subr.bf16.mxu0 0
        %490 = vmatpush1.bf16.msra.mxu0 %v481
        %491 = vmatprep.subr.bf16.mxu0 0
        %492 = vmatpush1.bf16.msra.mxu0 %v482
        %493 = vmatprep.subr.bf16.mxu0 0
        %494 = vmatpush1.bf16.msra.mxu0 0
        %495 = vmatprep.subr.bf16.mxu0 0
        %496 = vmatpush1.bf16.msra.mxu0 0
        %497 = vmatprep.subr.bf16.mxu0 0
        %498 = vmatpush1.bf16.msra.mxu0 0
        %499 = vmatprep.subr.bf16.mxu0 0
        %500 = vmatpush1.bf16.msra.mxu0 0
        %501 = vmatprep.subr.bf16.mxu0 0
        %502 = vmatpush1.bf16.msra.mxu0 0
        %503 = vmatprep.subr.bf16.mxu0 0
        %504 = vmatpush1.bf16.msra.mxu0 0
        %505 = vmatprep.subr.bf16.mxu0 0
        %506 = vmatpush1.bf16.msra.mxu0 0
        %507 = vmatprep.subr.bf16.mxu0 0
        %508 = vmatpush1.bf16.msra.mxu0 0
        %509 = vmatprep.subr.bf16.mxu0 0
        %510 = vmatpush1.bf16.msra.mxu0 0
        %511 = vmatprep.subr.bf16.mxu0 0
        %512 = vmatpush1.bf16.msra.mxu0 0
        %513 = vmatprep.subr.bf16.mxu0 0
        %514 = vmatpush1.bf16.msra.mxu0 0
        %515 = vmatprep.subr.bf16.mxu0 0
        %516 = vmatpush1.bf16.msra.mxu0 0
        %517 = vmatprep.subr.bf16.mxu0 0
        %518 = vmatpush1.bf16.msra.mxu0 0
        %519 = vmatprep.subr.bf16.mxu0 0
        %520 = vmatpush1.bf16.msra.mxu0 0
        %521 = vmatprep.mubr.bf16.mxu0 0
        %522 = vmatmul.mubr.bf16.gmra.mrb[0].mxu0 %v487
        %v523 = vpop.f32.mrb[0].mxu0
        %v524 = vadd.f32 %v471, %v523
        %v525 = vpop.f32.mrb[0].mxu0
        %v526 = vpop.f32.mrb[0].mxu0
        %v527 = vadd.f32 %v471, %v526
        %v528 = vpop.f32.mrb[0].mxu0
        %529 = vdwg.mxu0
        %vm530 = vcmask 785408
        %531 = vst.msk [vmem:[#allocation3] sm:$0xff] %vm530, %v524
        %532 = vst.msk [vmem:[#allocation3 + $0x8] sm:$0xff] %vm530, %v527
        %v533 = vld [vmem:[%s434] sm:$0x3f]
        %v534 = vld [vmem:[#allocation2] sm:$0xff]
        loop: start=0, step=1, limit=2
        $region61: #{tpu_custom_call.1} parent=51 // loop_pre_header
          _
        $region62: #{tpu_custom_call.1} parent=51 // loop_header
          %s536 = sphi 0, %s540
          %p537 = scmp.ge.s32.totalorder %s536, 2
        $region63: #{tpu_custom_call.1} parent=51 // loop_header_branch
          %539 = sbr.rel (%p537) target = $region67
        $region64: #{tpu_custom_call.1} parent=51 // loop_body
          %s541 = smul.u32 %s536, 8
          %s542 = scalar_lea.vmem [#allocation3], %s541
          %v543 = vld [vmem:[%s542] sm:$0xff]
          %v544 = vmul.f32 %v543, 0.35355338
          %v545 = vpack.c.bf16 %v544, %v544
          %v546 = vpack.c.bf16 %v543, %v543
          %548 = vrot.lane.b32.xlu0 %v546, 96
          %v549 = vpop.permute.xlu0 %548
          %vm550 = vcmask 64512
          %v552 = vsel %vm550, %v545, 0
          %v555 = vsel %vm550, %v549, 0
          %557 = vmatprep.subr.bf16.mxu0 0
          %558 = vmatpush1.bf16.xpose.msra.mxu0 %v555
          %559 = vmatprep.subr.bf16.mxu0 0
          %560 = vmatpush1.bf16.xpose.msra.mxu0 0
          %561 = vmatprep.subr.bf16.mxu0 0
          %562 = vmatpush1.bf16.xpose.msra.mxu0 0
          %563 = vmatprep.subr.bf16.mxu0 0
          %564 = vmatpush1.bf16.xpose.msra.mxu0 0
          %565 = vmatprep.subr.bf16.mxu0 0
          %566 = vmatpush1.bf16.xpose.msra.mxu0 0
          %567 = vmatprep.subr.bf16.mxu0 0
          %568 = vmatpush1.bf16.xpose.msra.mxu0 0
          %569 = vmatprep.subr.bf16.mxu0 0
          %570 = vmatpush1.bf16.xpose.msra.mxu0 0
          %571 = vmatprep.subr.bf16.mxu0 0
          %572 = vmatpush1.bf16.xpose.msra.mxu0 0
          %573 = vmatprep.subr.bf16.mxu0 0
          %574 = vmatpush1.bf16.xpose.msra.mxu0 0
          %575 = vmatprep.subr.bf16.mxu0 0
          %576 = vmatpush1.bf16.xpose.msra.mxu0 0
          %577 = vmatprep.subr.bf16.mxu0 0
          %578 = vmatpush1.bf16.xpose.msra.mxu0 0
          %579 = vmatprep.subr.bf16.mxu0 0
          %580 = vmatpush1.bf16.xpose.msra.mxu0 0
          %581 = vmatprep.subr.bf16.mxu0 0
          %582 = vmatpush1.bf16.xpose.msra.mxu0 0
          %583 = vmatprep.subr.bf16.mxu0 0
          %584 = vmatpush1.bf16.xpose.msra.mxu0 0
          %585 = vmatprep.subr.bf16.mxu0 0
          %586 = vmatpush1.bf16.xpose.msra.mxu0 0
          %587 = vmatprep.subr.bf16.mxu0 0
          %588 = vmatpush1.bf16.xpose.msra.mxu0 0
          %589 = vmatprep.mubr.bf16.mxu0 0
          %590 = vmatmul.mubr.bf16.gmra.mrb[0].mxu0 %v552
          %v591 = vpop.f32.mrb[0].mxu0
          %v592 = vadd.f32 %v534, %v591
          %v593 = vpop.f32.mrb[0].mxu0
          %v594 = vpop.f32.mrb[0].mxu0
          %v595 = vpop.f32.mrb[0].mxu0
          %596 = vdwg.mxu0
          %v597 = vsel %vm550, %v592, -inf
          %598 = vmax.xlane.f32.xlu0 %v597
          %v599 = vpop.xlane.xlu0 %598
          %v600 = vsub.f32 %v592, %v599
          %v601 = vmul.f32 %v600, 1.442695
          %v602 = vpow.pop %v601
          %v603 = vsel %vm550, %v602, 0.0
          %604 = vadd.xlane.f32.xlu0 %v603
          %v605 = vpop.xlane.xlu0 %604
          %v606 = vrcp.pop %v605
          %v607 = vmul.f32 %v602, %v606
          %v608 = vpack.c.bf16 %v607, %v607
          %609 = vrot.lane.b32.xlu0 %v546, 64
          %v610 = vpop.permute.xlu0 %609
          %v612 = vsel %vm550, %v608, 0
          %vm614 = vcmask 1043456
          %v616 = vsel %vm614, %v610, 0
          %618 = vmatprep.subr.bf16.mxu0 0
          %619 = vmatpush1.bf16.msra.mxu0 %v616
          %620 = vmatprep.subr.bf16.mxu0 0
          %621 = vmatpush1.bf16.msra.mxu0 0
          %622 = vmatprep.subr.bf16.mxu0 0
          %623 = vmatpush1.bf16.msra.mxu0 0
          %624 = vmatprep.subr.bf16.mxu0 0
          %625 = vmatpush1.bf16.msra.mxu0 0
          %626 = vmatprep.subr.bf16.mxu0 0
          %627 = vmatpush1.bf16.msra.mxu0 0
          %628 = vmatprep.subr.bf16.mxu0 0
          %629 = vmatpush1.bf16.msra.mxu0 0
          %630 = vmatprep.subr.bf16.mxu0 0
          %631 = vmatpush1.bf16.msra.mxu0 0
          %632 = vmatprep.subr.bf16.mxu0 0
          %633 = vmatpush1.bf16.msra.mxu0 0
          %634 = vmatprep.subr.bf16.mxu0 0
          %635 = vmatpush1.bf16.msra.mxu0 0
          %636 = vmatprep.subr.bf16.mxu0 0
          %637 = vmatpush1.bf16.msra.mxu0 0
          %638 = vmatprep.subr.bf16.mxu0 0
          %639 = vmatpush1.bf16.msra.mxu0 0
          %640 = vmatprep.subr.bf16.mxu0 0
          %641 = vmatpush1.bf16.msra.mxu0 0
          %642 = vmatprep.subr.bf16.mxu0 0
          %643 = vmatpush1.bf16.msra.mxu0 0
          %644 = vmatprep.subr.bf16.mxu0 0
          %645 = vmatpush1.bf16.msra.mxu0 0
          %646 = vmatprep.subr.bf16.mxu0 0
          %647 = vmatpush1.bf16.msra.mxu0 0
          %648 = vmatprep.subr.bf16.mxu0 0
          %649 = vmatpush1.bf16.msra.mxu0 0
          %650 = vmatprep.mubr.bf16.mxu0 0
          %651 = vmatmul.mubr.bf16.gmra.mrb[0].mxu0 %v612
          %v652 = vpop.f32.mrb[0].mxu0
          %v653 = vadd.f32 0.0, %v652
          %v654 = vpop.f32.mrb[0].mxu0
          %v655 = vpop.f32.mrb[0].mxu0
          %v656 = vpop.f32.mrb[0].mxu0
          %657 = vdwg.mxu0
          %s658 = scalar_lea.vmem [#allocation4], %s541
          %659 = vst.msk [vmem:[%s658] sm:$0xff] %vm550, %v653
          %661 = vrot.lane.b32.xlu0 %v545, 120
          %v662 = vpop.permute.xlu0 %661
          %663 = vrot.lane.b32.xlu0 %v546, 88
          %v664 = vpop.permute.xlu0 %663
          %v666 = vsel %vm550, %v662, 0
          %v669 = vsel %vm550, %v664, 0
          %671 = vmatprep.subr.bf16.mxu0 0
          %672 = vmatpush1.bf16.xpose.msra.mxu0 %v669
          %673 = vmatprep.subr.bf16.mxu0 0
          %674 = vmatpush1.bf16.xpose.msra.mxu0 0
          %675 = vmatprep.subr.bf16.mxu0 0
          %676 = vmatpush1.bf16.xpose.msra.mxu0 0
          %677 = vmatprep.subr.bf16.mxu0 0
          %678 = vmatpush1.bf16.xpose.msra.mxu0 0
          %679 = vmatprep.subr.bf16.mxu0 0
          %680 = vmatpush1.bf16.xpose.msra.mxu0 0
          %681 = vmatprep.subr.bf16.mxu0 0
          %682 = vmatpush1.bf16.xpose.msra.mxu0 0
          %683 = vmatprep.subr.bf16.mxu0 0
          %684 = vmatpush1.bf16.xpose.msra.mxu0 0
          %685 = vmatprep.subr.bf16.mxu0 0
          %686 = vmatpush1.bf16.xpose.msra.mxu0 0
          %687 = vmatprep.subr.bf16.mxu0 0
          %688 = vmatpush1.bf16.xpose.msra.mxu0 0
          %689 = vmatprep.subr.bf16.mxu0 0
          %690 = vmatpush1.bf16.xpose.msra.mxu0 0
          %691 = vmatprep.subr.bf16.mxu0 0
          %692 = vmatpush1.bf16.xpose.msra.mxu0 0
          %693 = vmatprep.subr.bf16.mxu0 0
          %694 = vmatpush1.bf16.xpose.msra.mxu0 0
          %695 = vmatprep.subr.bf16.mxu0 0
          %696 = vmatpush1.bf16.xpose.msra.mxu0 0
          %697 = vmatprep.subr.bf16.mxu0 0
          %698 = vmatpush1.bf16.xpose.msra.mxu0 0
          %699 = vmatprep.subr.bf16.mxu0 0
          %700 = vmatpush1.bf16.xpose.msra.mxu0 0
          %701 = vmatprep.subr.bf16.mxu0 0
          %702 = vmatpush1.bf16.xpose.msra.mxu0 0
          %703 = vmatprep.mubr.bf16.mxu0 0
          %704 = vmatmul.mubr.bf16.gmra.mrb[0].mxu0 %v666
          %v705 = vpop.f32.mrb[0].mxu0
          %v706 = vadd.f32 %v534, %v705
          %v707 = vpop.f32.mrb[0].mxu0
          %v708 = vpop.f32.mrb[0].mxu0
          %v709 = vpop.f32.mrb[0].mxu0
          %710 = vdwg.mxu0
          %v711 = vsel %vm550, %v706, -inf
          %712 = vmax.xlane.f32.xlu0 %v711
          %v713 = vpop.xlane.xlu0 %712
          %v714 = vsub.f32 %v706, %v713
          %v715 = vmul.f32 %v714, 1.442695
          %v716 = vpow.pop %v715
          %v717 = vsel %vm550, %v716, 0.0
          %718 = vadd.xlane.f32.xlu0 %v717
          %v719 = vpop.xlane.xlu0 %718
          %v720 = vrcp.pop %v719
          %v721 = vmul.f32 %v716, %v720
          %v722 = vpack.c.bf16 %v721, %v721
          %723 = vrot.lane.b32.xlu0 %v546, 56
          %v724 = vpop.permute.xlu0 %723
          %v726 = vsel %vm550, %v722, 0
          %v729 = vsel %vm614, %v724, 0
          %731 = vmatprep.subr.bf16.mxu0 0
          %732 = vmatpush1.bf16.msra.mxu0 %v729
          %733 = vmatprep.subr.bf16.mxu0 0
          %734 = vmatpush1.bf16.msra.mxu0 0
          %735 = vmatprep.subr.bf16.mxu0 0
          %736 = vmatpush1.bf16.msra.mxu0 0
          %737 = vmatprep.subr.bf16.mxu0 0
          %738 = vmatpush1.bf16.msra.mxu0 0
          %739 = vmatprep.subr.bf16.mxu0 0
          %740 = vmatpush1.bf16.msra.mxu0 0
          %741 = vmatprep.subr.bf16.mxu0 0
          %742 = vmatpush1.bf16.msra.mxu0 0
          %743 = vmatprep.subr.bf16.mxu0 0
          %744 = vmatpush1.bf16.msra.mxu0 0
          %745 = vmatprep.subr.bf16.mxu0 0
          %746 = vmatpush1.bf16.msra.mxu0 0
          %747 = vmatprep.subr.bf16.mxu0 0
          %748 = vmatpush1.bf16.msra.mxu0 0
          %749 = vmatprep.subr.bf16.mxu0 0
          %750 = vmatpush1.bf16.msra.mxu0 0
          %751 = vmatprep.subr.bf16.mxu0 0
          %752 = vmatpush1.bf16.msra.mxu0 0
          %753 = vmatprep.subr.bf16.mxu0 0
          %754 = vmatpush1.bf16.msra.mxu0 0
          %755 = vmatprep.subr.bf16.mxu0 0
          %756 = vmatpush1.bf16.msra.mxu0 0
          %757 = vmatprep.subr.bf16.mxu0 0
          %758 = vmatpush1.bf16.msra.mxu0 0
          %759 = vmatprep.subr.bf16.mxu0 0
          %760 = vmatpush1.bf16.msra.mxu0 0
          %761 = vmatprep.subr.bf16.mxu0 0
          %762 = vmatpush1.bf16.msra.mxu0 0
          %763 = vmatprep.mubr.bf16.mxu0 0
          %764 = vmatmul.mubr.bf16.gmra.mrb[0].mxu0 %v726
          %v765 = vpop.f32.mrb[0].mxu0
          %v766 = vadd.f32 0.0, %v765
          %v767 = vpop.f32.mrb[0].mxu0
          %v768 = vpop.f32.mrb[0].mxu0
          %v769 = vpop.f32.mrb[0].mxu0
          %770 = vdwg.mxu0
          %772 = vrot.lane.b32.xlu0 %v766, 8
          %v773 = vpop.permute.xlu0 %772
          %vm775 = vcmask 130112
          %776 = vst.msk [vmem:[%s658] sm:$0xff] %vm775, %v773
          %777 = vrot.lane.b32.xlu0 %v545, 112
          %v778 = vpop.permute.xlu0 %777
          %779 = vrot.lane.b32.xlu0 %v546, 80
          %v780 = vpop.permute.xlu0 %779
          %v782 = vsel %vm550, %v778, 0
          %v785 = vsel %vm550, %v780, 0
          %787 = vmatprep.subr.bf16.mxu0 0
          %788 = vmatpush1.bf16.xpose.msra.mxu0 %v785
          %789 = vmatprep.subr.bf16.mxu0 0
          %790 = vmatpush1.bf16.xpose.msra.mxu0 0
          %791 = vmatprep.subr.bf16.mxu0 0
          %792 = vmatpush1.bf16.xpose.msra.mxu0 0
          %793 = vmatprep.subr.bf16.mxu0 0
          %794 = vmatpush1.bf16.xpose.msra.mxu0 0
          %795 = vmatprep.subr.bf16.mxu0 0
          %796 = vmatpush1.bf16.xpose.msra.mxu0 0
          %797 = vmatprep.subr.bf16.mxu0 0
          %798 = vmatpush1.bf16.xpose.msra.mxu0 0
          %799 = vmatprep.subr.bf16.mxu0 0
          %800 = vmatpush1.bf16.xpose.msra.mxu0 0
          %801 = vmatprep.subr.bf16.mxu0 0
          %802 = vmatpush1.bf16.xpose.msra.mxu0 0
          %803 = vmatprep.subr.bf16.mxu0 0
          %804 = vmatpush1.bf16.xpose.msra.mxu0 0
          %805 = vmatprep.subr.bf16.mxu0 0
          %806 = vmatpush1.bf16.xpose.msra.mxu0 0
          %807 = vmatprep.subr.bf16.mxu0 0
          %808 = vmatpush1.bf16.xpose.msra.mxu0 0
          %809 = vmatprep.subr.bf16.mxu0 0
          %810 = vmatpush1.bf16.xpose.msra.mxu0 0
          %811 = vmatprep.subr.bf16.mxu0 0
          %812 = vmatpush1.bf16.xpose.msra.mxu0 0
          %813 = vmatprep.subr.bf16.mxu0 0
          %814 = vmatpush1.bf16.xpose.msra.mxu0 0
          %815 = vmatprep.subr.bf16.mxu0 0
          %816 = vmatpush1.bf16.xpose.msra.mxu0 0
          %817 = vmatprep.subr.bf16.mxu0 0
          %818 = vmatpush1.bf16.xpose.msra.mxu0 0
          %819 = vmatprep.mubr.bf16.mxu0 0
          %820 = vmatmul.mubr.bf16.gmra.mrb[0].mxu0 %v782
          %v821 = vpop.f32.mrb[0].mxu0
          %v822 = vadd.f32 %v534, %v821
          %v823 = vpop.f32.mrb[0].mxu0
          %v824 = vpop.f32.mrb[0].mxu0
          %v825 = vpop.f32.mrb[0].mxu0
          %826 = vdwg.mxu0
          %v827 = vsel %vm550, %v822, -inf
          %828 = vmax.xlane.f32.xlu0 %v827
          %v829 = vpop.xlane.xlu0 %828
          %v830 = vsub.f32 %v822, %v829
          %v831 = vmul.f32 %v830, 1.442695
          %v832 = vpow.pop %v831
          %v833 = vsel %vm550, %v832, 0.0
          %834 = vadd.xlane.f32.xlu0 %v833
          %v835 = vpop.xlane.xlu0 %834
          %v836 = vrcp.pop %v835
          %v837 = vmul.f32 %v832, %v836
          %v838 = vpack.c.bf16 %v837, %v837
          %839 = vrot.lane.b32.xlu0 %v546, 48
          %v840 = vpop.permute.xlu0 %839
          %v842 = vsel %vm550, %v838, 0
          %v845 = vsel %vm614, %v840, 0
          %847 = vmatprep.subr.bf16.mxu0 0
          %848 = vmatpush1.bf16.msra.mxu0 %v845
          %849 = vmatprep.subr.bf16.mxu0 0
          %850 = vmatpush1.bf16.msra.mxu0 0
          %851 = vmatprep.subr.bf16.mxu0 0
          %852 = vmatpush1.bf16.msra.mxu0 0
          %853 = vmatprep.subr.bf16.mxu0 0
          %854 = vmatpush1.bf16.msra.mxu0 0
          %855 = vmatprep.subr.bf16.mxu0 0
          %856 = vmatpush1.bf16.msra.mxu0 0
          %857 = vmatprep.subr.bf16.mxu0 0
          %858 = vmatpush1.bf16.msra.mxu0 0
          %859 = vmatprep.subr.bf16.mxu0 0
          %860 = vmatpush1.bf16.msra.mxu0 0
          %861 = vmatprep.subr.bf16.mxu0 0
          %862 = vmatpush1.bf16.msra.mxu0 0
          %863 = vmatprep.subr.bf16.mxu0 0
          %864 = vmatpush1.bf16.msra.mxu0 0
          %865 = vmatprep.subr.bf16.mxu0 0
          %866 = vmatpush1.bf16.msra.mxu0 0
          %867 = vmatprep.subr.bf16.mxu0 0
          %868 = vmatpush1.bf16.msra.mxu0 0
          %869 = vmatprep.subr.bf16.mxu0 0
          %870 = vmatpush1.bf16.msra.mxu0 0
          %871 = vmatprep.subr.bf16.mxu0 0
          %872 = vmatpush1.bf16.msra.mxu0 0
          %873 = vmatprep.subr.bf16.mxu0 0
          %874 = vmatpush1.bf16.msra.mxu0 0
          %875 = vmatprep.subr.bf16.mxu0 0
          %876 = vmatpush1.bf16.msra.mxu0 0
          %877 = vmatprep.subr.bf16.mxu0 0
          %878 = vmatpush1.bf16.msra.mxu0 0
          %879 = vmatprep.mubr.bf16.mxu0 0
          %880 = vmatmul.mubr.bf16.gmra.mrb[0].mxu0 %v842
          %v881 = vpop.f32.mrb[0].mxu0
          %v882 = vadd.f32 0.0, %v881
          %v883 = vpop.f32.mrb[0].mxu0
          %v884 = vpop.f32.mrb[0].mxu0
          %v885 = vpop.f32.mrb[0].mxu0
          %886 = vdwg.mxu0
          %888 = vrot.lane.b32.xlu0 %v882, 16
          %v889 = vpop.permute.xlu0 %888
          %vm891 = vcmask 195712
          %892 = vst.msk [vmem:[%s658] sm:$0xff] %vm891, %v889
          %893 = vrot.lane.b32.xlu0 %v545, 104
          %v894 = vpop.permute.xlu0 %893
          %895 = vrot.lane.b32.xlu0 %v546, 72
          %v896 = vpop.permute.xlu0 %895
          %v898 = vsel %vm550, %v894, 0
          %v901 = vsel %vm550, %v896, 0
          %903 = vmatprep.subr.bf16.mxu0 0
          %904 = vmatpush1.bf16.xpose.msra.mxu0 %v901
          %905 = vmatprep.subr.bf16.mxu0 0
          %906 = vmatpush1.bf16.xpose.msra.mxu0 0
          %907 = vmatprep.subr.bf16.mxu0 0
          %908 = vmatpush1.bf16.xpose.msra.mxu0 0
          %909 = vmatprep.subr.bf16.mxu0 0
          %910 = vmatpush1.bf16.xpose.msra.mxu0 0
          %911 = vmatprep.subr.bf16.mxu0 0
          %912 = vmatpush1.bf16.xpose.msra.mxu0 0
          %913 = vmatprep.subr.bf16.mxu0 0
          %914 = vmatpush1.bf16.xpose.msra.mxu0 0
          %915 = vmatprep.subr.bf16.mxu0 0
          %916 = vmatpush1.bf16.xpose.msra.mxu0 0
          %917 = vmatprep.subr.bf16.mxu0 0
          %918 = vmatpush1.bf16.xpose.msra.mxu0 0
          %919 = vmatprep.subr.bf16.mxu0 0
          %920 = vmatpush1.bf16.xpose.msra.mxu0 0
          %921 = vmatprep.subr.bf16.mxu0 0
          %922 = vmatpush1.bf16.xpose.msra.mxu0 0
          %923 = vmatprep.subr.bf16.mxu0 0
          %924 = vmatpush1.bf16.xpose.msra.mxu0 0
          %925 = vmatprep.subr.bf16.mxu0 0
          %926 = vmatpush1.bf16.xpose.msra.mxu0 0
          %927 = vmatprep.subr.bf16.mxu0 0
          %928 = vmatpush1.bf16.xpose.msra.mxu0 0
          %929 = vmatprep.subr.bf16.mxu0 0
          %930 = vmatpush1.bf16.xpose.msra.mxu0 0
          %931 = vmatprep.subr.bf16.mxu0 0
          %932 = vmatpush1.bf16.xpose.msra.mxu0 0
          %933 = vmatprep.subr.bf16.mxu0 0
          %934 = vmatpush1.bf16.xpose.msra.mxu0 0
          %935 = vmatprep.mubr.bf16.mxu0 0
          %936 = vmatmul.mubr.bf16.gmra.mrb[0].mxu0 %v898
          %v937 = vpop.f32.mrb[0].mxu0
          %v938 = vadd.f32 %v534, %v937
          %v939 = vpop.f32.mrb[0].mxu0
          %v940 = vpop.f32.mrb[0].mxu0
          %v941 = vpop.f32.mrb[0].mxu0
          %942 = vdwg.mxu0
          %v943 = vsel %vm550, %v938, -inf
          %944 = vmax.xlane.f32.xlu0 %v943
          %v945 = vpop.xlane.xlu0 %944
          %v946 = vsub.f32 %v938, %v945
          %v947 = vmul.f32 %v946, 1.442695
          %v948 = vpow.pop %v947
          %v949 = vsel %vm550, %v948, 0.0
          %950 = vadd.xlane.f32.xlu0 %v949
          %v951 = vpop.xlane.xlu0 %950
          %v952 = vrcp.pop %v951
          %v953 = vmul.f32 %v948, %v952
          %v954 = vpack.c.bf16 %v953, %v953
          %955 = vrot.lane.b32.xlu0 %v546, 40
          %v956 = vpop.permute.xlu0 %955
          %v958 = vsel %vm550, %v954, 0
          %v961 = vsel %vm614, %v956, 0
          %963 = vmatprep.subr.bf16.mxu0 0
          %964 = vmatpush1.bf16.msra.mxu0 %v961
          %965 = vmatprep.subr.bf16.mxu0 0
          %966 = vmatpush1.bf16.msra.mxu0 0
          %967 = vmatprep.subr.bf16.mxu0 0
          %968 = vmatpush1.bf16.msra.mxu0 0
          %969 = vmatprep.subr.bf16.mxu0 0
          %970 = vmatpush1.bf16.msra.mxu0 0
          %971 = vmatprep.subr.bf16.mxu0 0
          %972 = vmatpush1.bf16.msra.mxu0 0
          %973 = vmatprep.subr.bf16.mxu0 0
          %974 = vmatpush1.bf16.msra.mxu0 0
          %975 = vmatprep.subr.bf16.mxu0 0
          %976 = vmatpush1.bf16.msra.mxu0 0
          %977 = vmatprep.subr.bf16.mxu0 0
          %978 = vmatpush1.bf16.msra.mxu0 0
          %979 = vmatprep.subr.bf16.mxu0 0
          %980 = vmatpush1.bf16.msra.mxu0 0
          %981 = vmatprep.subr.bf16.mxu0 0
          %982 = vmatpush1.bf16.msra.mxu0 0
          %983 = vmatprep.subr.bf16.mxu0 0
          %984 = vmatpush1.bf16.msra.mxu0 0
          %985 = vmatprep.subr.bf16.mxu0 0
          %986 = vmatpush1.bf16.msra.mxu0 0
          %987 = vmatprep.subr.bf16.mxu0 0
          %988 = vmatpush1.bf16.msra.mxu0 0
          %989 = vmatprep.subr.bf16.mxu0 0
          %990 = vmatpush1.bf16.msra.mxu0 0
          %991 = vmatprep.subr.bf16.mxu0 0
          %992 = vmatpush1.bf16.msra.mxu0 0
          %993 = vmatprep.subr.bf16.mxu0 0
          %994 = vmatpush1.bf16.msra.mxu0 0
          %995 = vmatprep.mubr.bf16.mxu0 0
          %996 = vmatmul.mubr.bf16.gmra.mrb[0].mxu0 %v958
          %v997 = vpop.f32.mrb[0].mxu0
          %v998 = vadd.f32 0.0, %v997
          %v999 = vpop.f32.mrb[0].mxu0
          %v1000 = vpop.f32.mrb[0].mxu0
          %v1001 = vpop.f32.mrb[0].mxu0
          %1002 = vdwg.mxu0
          %1004 = vrot.lane.b32.xlu0 %v998, 24
          %v1005 = vpop.permute.xlu0 %1004
          %vm1007 = vcmask 261312
          %1008 = vst.msk [vmem:[%s658] sm:$0xff] %vm1007, %v1005
        $region65: #{tpu_custom_call.1} parent=51 // loop_footer
          %s540 = sadd.s32 1, %s536
        $region66: #{tpu_custom_call.1} parent=51 // loop_footer_branch
          %535 = sbr.rel target = $region62
        $region67: #{tpu_custom_call.1} parent=51 // loop_exit
          _
        %v1009 = vld [vmem:[#allocation4] sm:$0xff]
        %v1010 = vld [vmem:[#allocation4 + $0x8] sm:$0xff]
        %v1011 = vpack.c.bf16 %v1010, %v1009
        %v1012 = vld [vmem:[%s417] sm:$0xf]
        %v1013 = vld [vmem:[%s417 + $0x4] sm:$0xf]
        %v1014 = vld [vmem:[%s417 + $0x8] sm:$0xf]
        %v1015 = vld [vmem:[%s417 + $0xc] sm:$0xf]
        %v1016 = vlaneseq
        %v1017 = vshrl.u32 %v1016, 7
        %v1018 = vsub.s32 0, %v1017
        %v1019 = vrot.slane %v533, %v1018
        %v1024 = vunpack.c.l.b16 %v1012
        %v1025 = vunpack.c.l.b16 %v1013
        %v1026 = vunpack.c.l.b16 %v1014
        %v1027 = vunpack.c.l.b16 %v1015
        %v1028 = vpack.c.b16 %v1025, %v1024
        %v1029 = vpack.c.b16 %v1027, %v1026
        %v1033 = vsel %vm485, %v1011, 0
        %1035 = vmatprep.subr.bf16.mxu0 0
        %1036 = vmatpush1.bf16.msra.mxu0 %v1028
        %1037 = vmatprep.subr.bf16.mxu0 0
        %1038 = vmatpush1.bf16.msra.mxu0 %v1029
        %1039 = vmatprep.subr.bf16.mxu0 0
        %1040 = vmatpush1.bf16.msra.mxu0 0
        %1041 = vmatprep.subr.bf16.mxu0 0
        %1042 = vmatpush1.bf16.msra.mxu0 0
        %1043 = vmatprep.subr.bf16.mxu0 0
        %1044 = vmatpush1.bf16.msra.mxu0 0
        %1045 = vmatprep.subr.bf16.mxu0 0
        %1046 = vmatpush1.bf16.msra.mxu0 0
        %1047 = vmatprep.subr.bf16.mxu0 0
        %1048 = vmatpush1.bf16.msra.mxu0 0
        %1049 = vmatprep.subr.bf16.mxu0 0
        %1050 = vmatpush1.bf16.msra.mxu0 0
        %1051 = vmatprep.subr.bf16.mxu0 0
        %1052 = vmatpush1.bf16.msra.mxu0 0
        %1053 = vmatprep.subr.bf16.mxu0 0
        %1054 = vmatpush1.bf16.msra.mxu0 0
        %1055 = vmatprep.subr.bf16.mxu0 0
        %1056 = vmatpush1.bf16.msra.mxu0 0
        %1057 = vmatprep.subr.bf16.mxu0 0
        %1058 = vmatpush1.bf16.msra.mxu0 0
        %1059 = vmatprep.subr.bf16.mxu0 0
        %1060 = vmatpush1.bf16.msra.mxu0 0
        %1061 = vmatprep.subr.bf16.mxu0 0
        %1062 = vmatpush1.bf16.msra.mxu0 0
        %1063 = vmatprep.subr.bf16.mxu0 0
        %1064 = vmatpush1.bf16.msra.mxu0 0
        %1065 = vmatprep.subr.bf16.mxu0 0
        %1066 = vmatpush1.bf16.msra.mxu0 0
        %1067 = vmatprep.mubr.bf16.mxu0 0
        %1068 = vmatmul.mubr.bf16.gmra.mrb[0].mxu0 %v1033
        %v1069 = vpop.f32.mrb[0].mxu0
        %v1070 = vadd.f32 %v1019, %v1069
        %v1071 = vpop.f32.mrb[0].mxu0
        %v1072 = vpop.f32.mrb[0].mxu0
        %v1073 = vadd.f32 %v1019, %v1072
        %v1074 = vpop.f32.mrb[0].mxu0
        %1075 = vdwg.mxu0
        %v1076 = vadd.f32 %v459, %v1070
        %v1077 = vadd.f32 %v460, %v1073
        %v1078 = vsel %vm485, %v1076, 0.0
        %1079 = vadd.xlane.f32.xlu0 %v1078
        %v1080 = vpop.xlane.xlu0 %1079
        %v1081 = vsel %vm485, %v1077, 0.0
        %1082 = vadd.xlane.f32.xlu0 %v1081
        %v1083 = vpop.xlane.xlu0 %1082
        %v1084 = vrcp.pop 32.0
        %v1085 = vmul.f32 %v1080, %v1084
        %v1086 = vmul.f32 %v1083, %v1084
        %v1087 = vsub.f32 %v1076, %v1085
        %v1088 = vsub.f32 %v1077, %v1086
        %v1089 = vmul.f32 %v1087, %v1087
        %v1090 = vmul.f32 %v1088, %v1088
        %v1091 = vsel %vm485, %v1089, 0.0
        %1092 = vadd.xlane.f32.xlu0 %v1091
        %v1093 = vpop.xlane.xlu0 %1092
        %v1094 = vsel %vm485, %v1090, 0.0
        %1095 = vadd.xlane.f32.xlu0 %v1094
        %v1096 = vpop.xlane.xlu0 %1095
        %v1097 = vmul.f32 %v1093, %v1084
        %v1098 = vmul.f32 %v1096, %v1084
        %v1099 = vadd.f32 %v1097, 1e-05
        %v1100 = vadd.f32 %v1098, 1e-05
        %v1101 = vrsqrt.pop %v1099
        %v1102 = vrsqrt.pop %v1100
        %v1103 = vmul.f32 %v1087, %v1101
        %v1104 = vmul.f32 %v1088, %v1102
        %v1105 = vlaneseq
        %v1106 = vshrl.u32 %v1105, 7
        %v1107 = vsub.s32 1, %v1106
        %v1108 = vrot.slane %v533, %v1107
        %v1109 = vmul.f32 %v1103, %v1108
        %v1110 = vmul.f32 %v1104, %v1108
        %v1111 = vlaneseq
        %v1112 = vshrl.u32 %v1111, 7
        %v1113 = vsub.s32 2, %v1112
        %v1114 = vrot.slane %v533, %v1113
        %v1115 = vadd.f32 %v1109, %v1114
        %v1116 = vadd.f32 %v1110, %v1114
        %v1117 = vpack.c.bf16 %v1116, %v1115
        %v1118 = vld [vmem:[%s422] sm:$0xf]
        %v1119 = vld [vmem:[%s422 + $0x4] sm:$0xf]
        %v1120 = vld [vmem:[%s422 + $0x8] sm:$0xf]
        %v1121 = vld [vmem:[%s422 + $0xc] sm:$0xf]
        %v1122 = vld [vmem:[%s437] sm:$0x1]
        %v1124 = vlaneseq
        %v1125 = vshrl.u32 %v1124, 7
        %v1126 = vsub.s32 0, %v1125
        %v1127 = vrot.slane %v1122, %v1126
        %v1133 = vunpack.c.l.b16 %v1118
        %v1134 = vunpack.c.l.b16 %v1119
        %v1135 = vunpack.c.l.b16 %v1120
        %v1136 = vunpack.c.l.b16 %v1121
        %v1137 = vpack.c.b16 %v1134, %v1133
        %v1138 = vpack.c.b16 %v1136, %v1135
        %v1142 = vsel %vm485, %v1117, 0
        %1144 = vmatprep.subr.bf16.mxu0 0
        %1145 = vmatpush1.bf16.msra.mxu0 %v1137
        %1146 = vmatprep.subr.bf16.mxu0 0
        %1147 = vmatpush1.bf16.msra.mxu0 %v1138
        %1148 = vmatprep.subr.bf16.mxu0 0
        %1149 = vmatpush1.bf16.msra.mxu0 0
        %1150 = vmatprep.subr.bf16.mxu0 0
        %1151 = vmatpush1.bf16.msra.mxu0 0
        %1152 = vmatprep.subr.bf16.mxu0 0
        %1153 = vmatpush1.bf16.msra.mxu0 0
        %1154 = vmatprep.subr.bf16.mxu0 0
        %1155 = vmatpush1.bf16.msra.mxu0 0
        %1156 = vmatprep.subr.bf16.mxu0 0
        %1157 = vmatpush1.bf16.msra.mxu0 0
        %1158 = vmatprep.subr.bf16.mxu0 0
        %1159 = vmatpush1.bf16.msra.mxu0 0
        %1160 = vmatprep.subr.bf16.mxu0 0
        %1161 = vmatpush1.bf16.msra.mxu0 0
        %1162 = vmatprep.subr.bf16.mxu0 0
        %1163 = vmatpush1.bf16.msra.mxu0 0
        %1164 = vmatprep.subr.bf16.mxu0 0
        %1165 = vmatpush1.bf16.msra.mxu0 0
        %1166 = vmatprep.subr.bf16.mxu0 0
        %1167 = vmatpush1.bf16.msra.mxu0 0
        %1168 = vmatprep.subr.bf16.mxu0 0
        %1169 = vmatpush1.bf16.msra.mxu0 0
        %1170 = vmatprep.subr.bf16.mxu0 0
        %1171 = vmatpush1.bf16.msra.mxu0 0
        %1172 = vmatprep.subr.bf16.mxu0 0
        %1173 = vmatpush1.bf16.msra.mxu0 0
        %1174 = vmatprep.subr.bf16.mxu0 0
        %1175 = vmatpush1.bf16.msra.mxu0 0
        %1176 = vmatprep.mubr.bf16.mxu0 0
        %1177 = vmatmul.mubr.bf16.gmra.mrb[0].mxu0 %v1142
        %v1178 = vpop.f32.mrb[0].mxu0
        %v1179 = vadd.f32 %v1127, %v1178
        %v1180 = vpop.f32.mrb[0].mxu0
        %v1181 = vpop.f32.mrb[0].mxu0
        %v1182 = vadd.f32 %v1127, %v1181
        %v1183 = vpop.f32.mrb[0].mxu0
        %1184 = vdwg.mxu0
        %v1185 = vxor.u32 %v1179, 2147483648
        %v1186 = vxor.u32 %v1182, 2147483648
        %v1187 = vmul.f32 %v1185, 1.442695
        %v1188 = vpow.pop %v1187
        %v1189 = vmul.f32 %v1186, 1.442695
        %v1190 = vpow.pop %v1189
        %v1191 = vadd.f32 %v1188, 1.0
        %v1192 = vadd.f32 %v1190, 1.0
        %v1193 = vrcp.pop %v1191
        %v1194 = vmul.f32 1.0, %v1193
        %v1195 = vrcp.pop %v1192
        %v1196 = vmul.f32 1.0, %v1195
        %v1197 = vmul.f32 %v1179, %v1194
        %v1198 = vmul.f32 %v1182, %v1196
        %v1199 = vpack.c.bf16 %v1198, %v1197
        %v1200 = vld [vmem:[%s427] sm:$0xf]
        %v1201 = vld [vmem:[%s427 + $0x4] sm:$0xf]
        %v1202 = vld [vmem:[%s427 + $0x8] sm:$0xf]
        %v1203 = vld [vmem:[%s427 + $0xc] sm:$0xf]
        %v1204 = vld [vmem:[%s427 + $0x10] sm:$0xf]
        %v1205 = vld [vmem:[%s427 + $0x14] sm:$0xf]
        %v1206 = vld [vmem:[%s427 + $0x18] sm:$0xf]
        %v1207 = vld [vmem:[%s427 + $0x1c] sm:$0xf]
        %v1208 = vlaneseq
        %v1209 = vshrl.u32 %v1208, 7
        %v1210 = vsub.s32 3, %v1209
        %v1211 = vrot.slane %v533, %v1210
        %v1220 = vunpack.c.l.b16 %v1200
        %v1221 = vunpack.c.l.b16 %v1201
        %v1222 = vunpack.c.l.b16 %v1202
        %v1223 = vunpack.c.l.b16 %v1203
        %v1224 = vunpack.c.l.b16 %v1204
        %v1225 = vunpack.c.l.b16 %v1205
        %v1226 = vunpack.c.l.b16 %v1206
        %v1227 = vunpack.c.l.b16 %v1207
        %v1228 = vpack.c.b16 %v1221, %v1220
        %v1229 = vpack.c.b16 %v1223, %v1222
        %v1230 = vpack.c.b16 %v1225, %v1224
        %v1231 = vpack.c.b16 %v1227, %v1226
        %vm1236 = vcmask 523264
        %v1238 = vsel %vm1236, %v1199, 0
        %1240 = vmatprep.subr.bf16.mxu0 0
        %1241 = vmatpush1.bf16.msra.mxu0 %v1228
        %1242 = vmatprep.subr.bf16.mxu0 0
        %1243 = vmatpush1.bf16.msra.mxu0 %v1229
        %1244 = vmatprep.subr.bf16.mxu0 0
        %1245 = vmatpush1.bf16.msra.mxu0 %v1230
        %1246 = vmatprep.subr.bf16.mxu0 0
        %1247 = vmatpush1.bf16.msra.mxu0 %v1231
        %1248 = vmatprep.subr.bf16.mxu0 0
        %1249 = vmatpush1.bf16.msra.mxu0 0
        %1250 = vmatprep.subr.bf16.mxu0 0
        %1251 = vmatpush1.bf16.msra.mxu0 0
        %1252 = vmatprep.subr.bf16.mxu0 0
        %1253 = vmatpush1.bf16.msra.mxu0 0
        %1254 = vmatprep.subr.bf16.mxu0 0
        %1255 = vmatpush1.bf16.msra.mxu0 0
        %1256 = vmatprep.subr.bf16.mxu0 0
        %1257 = vmatpush1.bf16.msra.mxu0 0
        %1258 = vmatprep.subr.bf16.mxu0 0
        %1259 = vmatpush1.bf16.msra.mxu0 0
        %1260 = vmatprep.subr.bf16.mxu0 0
        %1261 = vmatpush1.bf16.msra.mxu0 0
        %1262 = vmatprep.subr.bf16.mxu0 0
        %1263 = vmatpush1.bf16.msra.mxu0 0
        %1264 = vmatprep.subr.bf16.mxu0 0
        %1265 = vmatpush1.bf16.msra.mxu0 0
        %1266 = vmatprep.subr.bf16.mxu0 0
        %1267 = vmatpush1.bf16.msra.mxu0 0
        %1268 = vmatprep.subr.bf16.mxu0 0
        %1269 = vmatpush1.bf16.msra.mxu0 0
        %1270 = vmatprep.subr.bf16.mxu0 0
        %1271 = vmatpush1.bf16.msra.mxu0 0
        %1272 = vmatprep.mubr.bf16.mxu0 0
        %1273 = vmatmul.mubr.bf16.gmra.mrb[0].mxu0 %v1238
        %v1274 = vpop.f32.mrb[0].mxu0
        %v1275 = vadd.f32 %v1211, %v1274
        %v1276 = vpop.f32.mrb[0].mxu0
        %v1277 = vpop.f32.mrb[0].mxu0
        %v1278 = vadd.f32 %v1211, %v1277
        %v1279 = vpop.f32.mrb[0].mxu0
        %1280 = vdwg.mxu0
        %v1281 = vadd.f32 %v1115, %v1275
        %v1282 = vadd.f32 %v1116, %v1278
        %v1283 = vsel %vm485, %v1281, 0.0
        %1284 = vadd.xlane.f32.xlu0 %v1283
        %v1285 = vpop.xlane.xlu0 %1284
        %v1286 = vsel %vm485, %v1282, 0.0
        %1287 = vadd.xlane.f32.xlu0 %v1286
        %v1288 = vpop.xlane.xlu0 %1287
        %v1289 = vmul.f32 %v1285, %v1084
        %v1290 = vmul.f32 %v1288, %v1084
        %v1291 = vsub.f32 %v1281, %v1289
        %v1292 = vsub.f32 %v1282, %v1290
        %v1293 = vmul.f32 %v1291, %v1291
        %v1294 = vmul.f32 %v1292, %v1292
        %v1295 = vsel %vm485, %v1293, 0.0
        %1296 = vadd.xlane.f32.xlu0 %v1295
        %v1297 = vpop.xlane.xlu0 %1296
        %v1298 = vsel %vm485, %v1294, 0.0
        %1299 = vadd.xlane.f32.xlu0 %v1298
        %v1300 = vpop.xlane.xlu0 %1299
        %v1301 = vmul.f32 %v1297, %v1084
        %v1302 = vmul.f32 %v1300, %v1084
        %v1303 = vadd.f32 %v1301, 1e-05
        %v1304 = vadd.f32 %v1302, 1e-05
        %v1305 = vrsqrt.pop %v1303
        %v1306 = vrsqrt.pop %v1304
        %v1307 = vmul.f32 %v1291, %v1305
        %v1308 = vmul.f32 %v1292, %v1306
        %v1309 = vlaneseq
        %v1310 = vshrl.u32 %v1309, 7
        %v1311 = vsub.s32 4, %v1310
        %v1312 = vrot.slane %v533, %v1311
        %v1313 = vmul.f32 %v1307, %v1312
        %v1314 = vmul.f32 %v1308, %v1312
        %v1315 = vlaneseq
        %v1316 = vshrl.u32 %v1315, 7
        %v1317 = vsub.s32 5, %v1316
        %v1318 = vrot.slane %v533, %v1317
        %v1319 = vadd.f32 %v1313, %v1318
        %v1320 = vadd.f32 %v1314, %v1318
        %1321 = vst.msk [vmem:[#allocation8] sm:$0xff] %vm485, %v1319
        %1322 = vst.msk [vmem:[#allocation8 + $0x8] sm:$0xff] %vm485, %v1320
        // Predicated region
        $region68: #{tpu_custom_call.1} parent=51 // pred_check
          %p1323 = pneg %p259
        $region69: #{tpu_custom_call.1} parent=51 // pred_check_branch
          %1325 = sbr.rel (%p1323) target = $region71
        $region70: #{tpu_custom_call.1} parent=51 // pred_region
          %s1326 = smul.u32 2, %s25
          %s1328 = ssub.s32 256, 256
          %1329 = vsyncadd [#allocation7], %s1328
          %s1330 = smul.addr %s1326, 128
          %s1331 = scalar_lea.hbm %s8, %s1330
          %s1332 = sshll.u32 [#allocation8], 4
          %s1333 = int_to_ptr.vmem [resolvable:$true] %s1332
          %1338 = dma.vmem_to_hbm [thread:$0]  %s1333, 256, %s1331, [#allocation7], 128, 128, 8
        $region71: #{tpu_custom_call.1} parent=51 // pred_fallthru
          _
        // Predicated region
        $region72: #{tpu_custom_call.1} parent=51 // pred_check
          %p1339 = pneg %p259
        $region73: #{tpu_custom_call.1} parent=51 // pred_check_branch
          %1341 = sbr.rel (%p1339) target = $region75
        $region74: #{tpu_custom_call.1} parent=51 // pred_region
          %1342 = dma.done [#allocation7], 256
        $region75: #{tpu_custom_call.1} parent=51 // pred_fallthru
          _
      $region52: #{tpu_custom_call.1} parent=5 // pred_fallthru
        _
      %p1343 = scmp.le.s32.totalorder 2, %s16
      // Predicated region
      $region76: #{tpu_custom_call.1} parent=5 // pred_check
        %p1344 = pneg %p1343
      $region77: #{tpu_custom_call.1} parent=5 // pred_check_branch
        %1346 = sbr.rel (%p1344) target = $region79
      $region78: #{tpu_custom_call.1} parent=5 // pred_region
        %s1347 = ssub.s32 %s16, 2
      $region79: #{tpu_custom_call.1} parent=5 // pred_fallthru
        _
    $region6: #{tpu_custom_call.1} parent=1 // loop_footer
      %s20 = sadd.s32 1, %s16
    $region7: #{tpu_custom_call.1} parent=1 // loop_footer_branch
      %15 = sbr.rel target = $region3
    $region8: #{tpu_custom_call.1} parent=1 // loop_exit
      _
    %1348 = vsyncpa [#allocation6], 1
    %s1349 = scalar_lea.sflag [#allocation6], 1
    %1350 = vsyncpa %s1349, 1
    %1351 = vsyncpa [#allocation7], 1
    %s1352 = scalar_lea.sflag [#allocation7], 1
    %1353 = vsyncpa %s1352, 1

</llo_original>
